<compile_context>
chip_gen: v7x
topology: tpu7x:2x2x1
jax: 0.10.0
libtpu: 0.0.40
codegen_flags: <defaults>
</compile_context>

<pallas_src>
import jax
import jax.numpy as jnp
from jax.experimental import pallas as pl
from jax.experimental.pallas import tpu as pltpu


def _fused_kernel(x_ref, w_ref, s1_ref, b1_ref, b2_ref, o_ref):
    # x_ref : (1, C, HW)      channels-first, spatial flattened onto the lane axis
    # w_ref : (TCO, C)        1x1-conv weight rows for this output-channel tile,
    #                         with the BN2 scale already folded in (row-scaled)
    # s1/b1 : (C, 1)          BN1 folded scale/shift (broadcast along lanes)
    # b2    : (TCO, 1)        BN2 folded shift
    # o_ref : (1, TCO, HW)
    x = x_ref[0]                                                    # (C, HW)
    h = jnp.maximum(x * s1_ref[...] + b1_ref[...], 0.0)             # BN1 + ReLU (VPU)
    y = jnp.dot(w_ref[...], h, preferred_element_type=jnp.float32)  # 1x1 conv (MXU)
    o_ref[0] = jnp.maximum(y + b2_ref[...], 0.0).astype(o_ref.dtype)  # BN2 + ReLU


def fused_bn_relu_conv_bn_relu(x_nchw, w_oi, s1, b1, s2, b2, *, tco=64):
    """x_nchw: (N, C, H, W) float32; w_oi: (C_out, C_in) 1x1-conv weight.
    s*/b*: folded BatchNorm scale/shift per channel."""
    N, C, H, W = x_nchw.shape
    Cout = w_oi.shape[0]
    HW = H * W
    assert Cout % tco == 0 and tco % 8 == 0, "cout tile must divide Cout and be a multiple of 8"

    # Pure reshapes (no transpose, no extra HBM pass): NCHW -> (N, C, H*W)
    x3d = x_nchw.reshape(N, C, HW)

    # Fold BN2 scale into the weight rows: s2 * (W @ h) == (diag(s2) W) @ h
    w_scaled = w_oi * s2[:, None]                      # (Cout, Cin)
    s1c = s1.reshape(C, 1)
    b1c = b1.reshape(C, 1)
    b2c = b2.reshape(Cout, 1)

    out3d = pl.pallas_call(
        _fused_kernel,
        out_shape=jax.ShapeDtypeStruct((N, Cout, HW), jnp.float32),
        grid_spec=pltpu.PrefetchScalarGridSpec(
            num_scalar_prefetch=0,
            grid=(N, Cout // tco),                      # (1, 2) for the spec shape
            in_specs=[
                pl.BlockSpec((1, C, HW), lambda n, j: (n, 0, 0)),   # full-channel, full-spatial x
                pl.BlockSpec((tco, C), lambda n, j: (j, 0)),        # weight rows (BN2-scaled)
                pl.BlockSpec((C, 1), lambda n, j: (0, 0)),          # BN1 scale
                pl.BlockSpec((C, 1), lambda n, j: (0, 0)),          # BN1 shift
                pl.BlockSpec((tco, 1), lambda n, j: (j, 0)),        # BN2 shift
            ],
            out_specs=pl.BlockSpec((1, tco, HW), lambda n, j: (n, j, 0)),
        ),
        compiler_params=pltpu.CompilerParams(
            dimension_semantics=("parallel", "parallel")),
    )(x3d, w_scaled, s1c, b1c, b2c)

    # (N, Cout, H*W) -> NCHW (pure reshape)
    return out3d.reshape(N, Cout, H, W)


def fold_bn(gamma, beta, mean, var, eps=1e-5):
    scale = gamma / jnp.sqrt(var + eps)
    shift = beta - mean * scale
    return scale, shift


if __name__ == "__main__":
    key = jax.random.PRNGKey(0)
    kx, kw, k1, k2, k3, k4 = jax.random.split(key, 6)

    N, C, H, W = 1, 128, 28, 28  # matches the module's expected input
    x = jax.random.normal(kx, (N, C, H, W), dtype=jnp.float32)

    # Conv2d(128, 128, 1x1, bias=False) weight, deterministic init.
    w = jax.random.normal(kw, (C, C), dtype=jnp.float32) * 0.05

    # BatchNorm2d params (affine=True) + running stats, deterministic init.
    gamma1 = 1.0 + 0.1 * jax.random.normal(k1, (C,), dtype=jnp.float32)
    beta1 = 0.1 * jax.random.normal(k2, (C,), dtype=jnp.float32)
    mean1 = jnp.zeros((C,), jnp.float32)
    var1 = jnp.ones((C,), jnp.float32)

    gamma2 = 1.0 + 0.1 * jax.random.normal(k3, (C,), dtype=jnp.float32)
    beta2 = 0.1 * jax.random.normal(k4, (C,), dtype=jnp.float32)
    mean2 = jnp.zeros((C,), jnp.float32)
    var2 = jnp.ones((C,), jnp.float32)

    s1, b1 = fold_bn(gamma1, beta1, mean1, var1)
    s2, b2 = fold_bn(gamma2, beta2, mean2, var2)

    out = fused_bn_relu_conv_bn_relu(x, w, s1, b1, s2, b2)
    out = jax.block_until_ready(out)

    # Pure-JAX reference check of the fused op (NCHW throughout).
    h_ref = jnp.maximum(x * s1[None, :, None, None] + b1[None, :, None, None], 0.0)
    y_ref = jnp.einsum("oc,nchw->nohw", w, h_ref)
    ref = jnp.maximum(y_ref * s2[None, :, None, None] + b2[None, :, None, None], 0.0)

    assert out.shape == (N, C, H, W)
    assert jnp.max(jnp.abs(out - ref)) < 1e-3
    print("KERNEL_OK")
</pallas_src>

<mosaic_0001>
module attributes {stable_mosaic.version = 11 : i64} {
  func.func @_fused_kernel(%arg0: i32, %arg1: i32, %arg2: memref<1x128x784xf32, #tpu.memory_space<vmem>>, %arg3: memref<64x128xf32, #tpu.memory_space<vmem>>, %arg4: memref<128x1xf32, #tpu.memory_space<vmem>>, %arg5: memref<128x1xf32, #tpu.memory_space<vmem>>, %arg6: memref<64x1xf32, #tpu.memory_space<vmem>>, %arg7: memref<1x64x784xf32, #tpu.memory_space<vmem>>) attributes {dimension_semantics = [#tpu.dimension_semantics<parallel>, #tpu.dimension_semantics<parallel>], iteration_bounds = array<i64: 1, 2>, scalar_prefetch = 0 : i64, scratch_operands = 0 : i64, tpu.core_type = #tpu.core_type<tc>, window_params = [{transform_indices = @transform_0, window_bounds = array<i64: 1, 128, 784>}, {transform_indices = @transform_1, window_bounds = array<i64: 64, 128>}, {pipeline_mode = #tpu.pipeline_mode<synchronous>, transform_indices = @transform_2, window_bounds = array<i64: 128, 1>}, {pipeline_mode = #tpu.pipeline_mode<synchronous>, transform_indices = @transform_3, window_bounds = array<i64: 128, 1>}, {transform_indices = @transform_4, window_bounds = array<i64: 64, 1>}, {transform_indices = @transform_5, window_bounds = array<i64: 1, 64, 784>}]} {
    %c0 = arith.constant 0 : index
    %c0_0 = arith.constant 0 : index
    %c0_1 = arith.constant 0 : index
    %0 = vector.load %arg2[%c0, %c0_0, %c0_1] : memref<1x128x784xf32, #tpu.memory_space<vmem>>, vector<1x128x784xf32>
    %1 = vector.shape_cast %0 : vector<1x128x784xf32> to vector<128x784xf32>
    %c0_2 = arith.constant 0 : index
    %c0_3 = arith.constant 0 : index
    %2 = vector.load %arg4[%c0_2, %c0_3] : memref<128x1xf32, #tpu.memory_space<vmem>>, vector<128x1xf32>
    %3 = vector.broadcast %2 : vector<128x1xf32> to vector<128x784xf32>
    %4 = arith.mulf %1, %3 : vector<128x784xf32>
    %c0_4 = arith.constant 0 : index
    %c0_5 = arith.constant 0 : index
    %5 = vector.load %arg5[%c0_4, %c0_5] : memref<128x1xf32, #tpu.memory_space<vmem>>, vector<128x1xf32>
    %6 = vector.broadcast %5 : vector<128x1xf32> to vector<128x784xf32>
    %7 = arith.addf %4, %6 : vector<128x784xf32>
    %cst = arith.constant 0.000000e+00 : f32
    %8 = vector.broadcast %cst : f32 to vector<128x784xf32>
    %9 = arith.maximumf %7, %8 : vector<128x784xf32>
    %c0_6 = arith.constant 0 : index
    %c0_7 = arith.constant 0 : index
    %10 = vector.load %arg3[%c0_6, %c0_7] : memref<64x128xf32, #tpu.memory_space<vmem>>, vector<64x128xf32>
    %cst_8 = arith.constant dense<0.000000e+00> : vector<64x784xf32>
    %11 = tpu.matmul %10, %9, %cst_8 {dimension_numbers = #tpu.dot_dimension_numbers<[1], [0], [0], [1], [0, 0, 1, 1], [], []>} : vector<64x128xf32>, vector<128x784xf32>, vector<64x784xf32> -> vector<64x784xf32>
    %c0_9 = arith.constant 0 : index
    %c0_10 = arith.constant 0 : index
    %12 = vector.load %arg6[%c0_9, %c0_10] : memref<64x1xf32, #tpu.memory_space<vmem>>, vector<64x1xf32>
    %13 = vector.broadcast %12 : vector<64x1xf32> to vector<64x784xf32>
    %14 = arith.addf %11, %13 : vector<64x784xf32>
    %cst_11 = arith.constant 0.000000e+00 : f32
    %15 = vector.broadcast %cst_11 : f32 to vector<64x784xf32>
    %16 = arith.maximumf %14, %15 : vector<64x784xf32>
    %c0_12 = arith.constant 0 : index
    %c0_13 = arith.constant 0 : index
    %c0_14 = arith.constant 0 : index
    %17 = vector.load %arg7[%c0_12, %c0_13, %c0_14] : memref<1x64x784xf32, #tpu.memory_space<vmem>>, vector<1x64x784xf32>
    %18 = vector.shape_cast %17 : vector<1x64x784xf32> to vector<64x784xf32>
    %19 = vector.shape_cast %16 : vector<64x784xf32> to vector<1x64x784xf32>
    tpu.vector_store %arg7[%c0_12, %c0_13, %c0_14], %19 {strides = array<i32>} : memref<1x64x784xf32, #tpu.memory_space<vmem>>, vector<1x64x784xf32>,
    return
  }
  func.func @transform_0(%arg0: i32, %arg1: i32) -> (i32, i32, i32) {
    %c0_i32 = arith.constant 0 : i32
    %c0_i32_0 = arith.constant 0 : i32
    %c0_i32_1 = arith.constant 0 : i32
    return %arg0, %c0_i32, %c0_i32_0 : i32, i32, i32
  }
  func.func @transform_1(%arg0: i32, %arg1: i32) -> (i32, i32) {
    %c0_i32 = arith.constant 0 : i32
    %c0_i32_0 = arith.constant 0 : i32
    return %arg1, %c0_i32 : i32, i32
  }
  func.func @transform_2(%arg0: i32, %arg1: i32) -> (i32, i32) {
    %c0_i32 = arith.constant 0 : i32
    %c0_i32_0 = arith.constant 0 : i32
    %c0_i32_1 = arith.constant 0 : i32
    return %c0_i32, %c0_i32_0 : i32, i32
  }
  func.func @transform_3(%arg0: i32, %arg1: i32) -> (i32, i32) {
    %c0_i32 = arith.constant 0 : i32
    %c0_i32_0 = arith.constant 0 : i32
    %c0_i32_1 = arith.constant 0 : i32
    return %c0_i32, %c0_i32_0 : i32, i32
  }
  func.func @transform_4(%arg0: i32, %arg1: i32) -> (i32, i32) {
    %c0_i32 = arith.constant 0 : i32
    %c0_i32_0 = arith.constant 0 : i32
    return %arg1, %c0_i32 : i32, i32
  }
  func.func @transform_5(%arg0: i32, %arg1: i32) -> (i32, i32, i32) {
    %c0_i32 = arith.constant 0 : i32
    %c0_i32_0 = arith.constant 0 : i32
    return %arg0, %arg1, %c0_i32 : i32, i32, i32
  }
}

</mosaic_0001>

<llo_original>
// kernel: tpu_custom_call.1
$region0: #{tpu_custom_call.1}
  #allocation0 [shape = 'u32[]', space=smem, size = 0x4, offset = 0x4, fixed_abs, tag = 'smem constant byte address 0x4 - core index']
  #allocation1 [shape = 'u32[144,128]{1,0:T(1,128)}', space=vmem, size = 0x12000, scoped, tag = 'internal scratch']
  %s0 = inlined_call_operand.vmem [shape: f32[1,128,784], index: 0, kind: input, shape index: {}]
  %s1 = inlined_call_operand.vmem [shape: f32[128,128], index: 1, kind: input, shape index: {}]
  %s2 = inlined_call_operand.vmem [shape: f32[128,1], index: 2, kind: input, shape index: {}]
  %s3 = inlined_call_operand.vmem [shape: f32[128,1], index: 3, kind: input, shape index: {}]
  %s4 = inlined_call_operand.vmem [shape: f32[128,1], index: 4, kind: input, shape index: {}]
  %s5 = inlined_call_operand.vmem [shape: f32[1,128,784], index: 5, kind: output, shape index: {}]
  %s6 = sld [smem:[#allocation0]]
  $region53: #{tpu_custom_call.1} parent=0
    _
  %s8 = ssub.s32 1, %s6
  %s9 = scalar_select 0, %s8, %s6
  loop: start=0, step=1, limit=4
  $region2: #{tpu_custom_call.1} parent=0 // loop_pre_header
    _
  $region3: #{tpu_custom_call.1} parent=0 // loop_header
    %s11 = sphi 0, %s15
    %p12 = scmp.ge.s32.totalorder %s11, 4
    %s18 = sphi 0, %s30
    %s19 = sphi 0, %s26
    %s20 = sphi 0, %s18
    %s21 = sphi 0, %s19
    %s22 = sphi 0, %s20
    %s23 = sphi 0, %s21
    %s33 = sphi 0, %s35
    %s36 = sphi 0, %s33
    %s37 = sphi 0, %s36
    %s53 = sphi 0, %s37
    %s59 = sphi 0, %s61
    %s62 = sphi 0, %s59
    %s63 = sphi 0, %s62
    %s79 = sphi 0, %s63
    %s83 = sphi 0, %s83
    %s85 = sphi 0, %s83
    %s86 = sphi 0, %s85
    %s100 = sphi 0, %s86
    %s104 = sphi 0, %s104
    %s106 = sphi 0, %s104
    %s107 = sphi 0, %s106
    %s121 = sphi 0, %s107
    %s127 = sphi 0, %s129
    %s130 = sphi 0, %s127
    %s131 = sphi 0, %s130
    %s147 = sphi 0, %s131
    %s155 = sphi 0, %s157
    %s158 = sphi 0, %s155
    %s159 = sphi 0, %s158
    %s175 = sphi 0, %s159
  $region4: #{tpu_custom_call.1} parent=0 // loop_header_branch
    %14 = sbr.rel (%p12) target = $region8
  $region5: #{tpu_custom_call.1} parent=0 // loop_body
    %s16 = ssub.s32 %s11, 1
    %s17 = ssub.s32 %s11, 2
    %s24 = sadd.s32 1, %s19
    %p25 = scmp.ge.s32.totalorder %s24, 2
    %s26 = scalar_select %p25, 0, %s24
    %s27 = sadd.s32 1, %s18
    %s28 = scalar_select %p25, %s27, %s18
    %p29 = scmp.ge.s32.totalorder %s28, 1
    %s30 = scalar_select %p29, 0, %s28
    %s31 = ssub.s32 %s18, %s30
    %p32 = scmp.eq.s32.totalorder %s31, 0
    %s34 = sadd.s32 %s33, 1
    %s35 = scalar_select %p32, %s33, %s34
    %p38 = pneg %p32
    %p39 = scmp.eq.s32.totalorder %s11, 1
    %p40 = por %p38, %p39
    %p41 = scmp.ne.s32.totalorder %s33, %s36
    %p42 = scmp.eq.s32.totalorder %s11, 0
    %p43 = por %p41, %p42
    %p44 = scmp.ne.s32.totalorder %s33, %s36
    %p45 = scmp.eq.s32.totalorder %s16, 1
    %p46 = por %p44, %p45
    %p47 = scmp.ne.s32.totalorder %s36, %s37
    %p48 = scmp.eq.s32.totalorder %s16, 0
    %p49 = por %p47, %p48
    %p50 = scmp.ne.s32.totalorder %s36, %s37
    %p51 = scmp.eq.s32.totalorder %s17, 1
    %p52 = por %p50, %p51
    %p54 = scmp.ne.s32.totalorder %s37, %s53
    %p55 = scmp.eq.s32.totalorder %s17, 0
    %p56 = por %p54, %p55
    %s57 = ssub.s32 %s19, %s26
    %p58 = scmp.eq.s32.totalorder %s57, 0
    %s60 = sadd.s32 %s59, 1
    %s61 = scalar_select %p58, %s59, %s60
    %p64 = pneg %p58
    %p65 = scmp.eq.s32.totalorder %s11, 1
    %p66 = por %p64, %p65
    %p67 = scmp.ne.s32.totalorder %s59, %s62
    %p68 = scmp.eq.s32.totalorder %s11, 0
    %p69 = por %p67, %p68
    %p70 = scmp.ne.s32.totalorder %s59, %s62
    %p71 = scmp.eq.s32.totalorder %s16, 1
    %p72 = por %p70, %p71
    %p73 = scmp.ne.s32.totalorder %s62, %s63
    %p74 = scmp.eq.s32.totalorder %s16, 0
    %p75 = por %p73, %p74
    %p76 = scmp.ne.s32.totalorder %s62, %s63
    %p77 = scmp.eq.s32.totalorder %s17, 1
    %p78 = por %p76, %p77
    %p80 = scmp.ne.s32.totalorder %s63, %s79
    %p81 = scmp.eq.s32.totalorder %s17, 0
    %p82 = por %p80, %p81
    %s84 = sadd.s32 %s83, 1
    %p87 = scmp.eq.s32.totalorder %s11, 1
    %p88 = scmp.ne.s32.totalorder %s83, %s85
    %p89 = scmp.eq.s32.totalorder %s11, 0
    %p90 = por %p88, %p89
    %p91 = scmp.ne.s32.totalorder %s83, %s85
    %p92 = scmp.eq.s32.totalorder %s16, 1
    %p93 = por %p91, %p92
    %p94 = scmp.ne.s32.totalorder %s85, %s86
    %p95 = scmp.eq.s32.totalorder %s16, 0
    %p96 = por %p94, %p95
    %p97 = scmp.ne.s32.totalorder %s85, %s86
    %p98 = scmp.eq.s32.totalorder %s17, 1
    %p99 = por %p97, %p98
    %p101 = scmp.ne.s32.totalorder %s86, %s100
    %p102 = scmp.eq.s32.totalorder %s17, 0
    %p103 = por %p101, %p102
    %s105 = sadd.s32 %s104, 1
    %p108 = scmp.eq.s32.totalorder %s11, 1
    %p109 = scmp.ne.s32.totalorder %s104, %s106
    %p110 = scmp.eq.s32.totalorder %s11, 0
    %p111 = por %p109, %p110
    %p112 = scmp.ne.s32.totalorder %s104, %s106
    %p113 = scmp.eq.s32.totalorder %s16, 1
    %p114 = por %p112, %p113
    %p115 = scmp.ne.s32.totalorder %s106, %s107
    %p116 = scmp.eq.s32.totalorder %s16, 0
    %p117 = por %p115, %p116
    %p118 = scmp.ne.s32.totalorder %s106, %s107
    %p119 = scmp.eq.s32.totalorder %s17, 1
    %p120 = por %p118, %p119
    %p122 = scmp.ne.s32.totalorder %s107, %s121
    %p123 = scmp.eq.s32.totalorder %s17, 0
    %p124 = por %p122, %p123
    %s125 = ssub.s32 %s19, %s26
    %p126 = scmp.eq.s32.totalorder %s125, 0
    %s128 = sadd.s32 %s127, 1
    %s129 = scalar_select %p126, %s127, %s128
    %p132 = pneg %p126
    %p133 = scmp.eq.s32.totalorder %s11, 1
    %p134 = por %p132, %p133
    %p135 = scmp.ne.s32.totalorder %s127, %s130
    %p136 = scmp.eq.s32.totalorder %s11, 0
    %p137 = por %p135, %p136
    %p138 = scmp.ne.s32.totalorder %s127, %s130
    %p139 = scmp.eq.s32.totalorder %s16, 1
    %p140 = por %p138, %p139
    %p141 = scmp.ne.s32.totalorder %s130, %s131
    %p142 = scmp.eq.s32.totalorder %s16, 0
    %p143 = por %p141, %p142
    %p144 = scmp.ne.s32.totalorder %s130, %s131
    %p145 = scmp.eq.s32.totalorder %s17, 1
    %p146 = por %p144, %p145
    %p148 = scmp.ne.s32.totalorder %s131, %s147
    %p149 = scmp.eq.s32.totalorder %s17, 0
    %p150 = por %p148, %p149
    %s151 = ssub.s32 %s18, %s30
    %s152 = ssub.s32 %s19, %s26
    %s153 = sor.u32 %s151, %s152
    %p154 = scmp.eq.s32.totalorder %s153, 0
    %s156 = sadd.s32 %s155, 1
    %s157 = scalar_select %p154, %s155, %s156
    %p160 = pneg %p154
    %p161 = scmp.eq.s32.totalorder %s11, 1
    %p162 = por %p160, %p161
    %p163 = scmp.ne.s32.totalorder %s155, %s158
    %p164 = scmp.eq.s32.totalorder %s11, 0
    %p165 = por %p163, %p164
    %p166 = scmp.ne.s32.totalorder %s155, %s158
    %p167 = scmp.eq.s32.totalorder %s16, 1
    %p168 = por %p166, %p167
    %p169 = scmp.ne.s32.totalorder %s158, %s159
    %p170 = scmp.eq.s32.totalorder %s16, 0
    %p171 = por %p169, %p170
    %p172 = scmp.ne.s32.totalorder %s158, %s159
    %p173 = scmp.eq.s32.totalorder %s17, 1
    %p174 = por %p172, %p173
    %p176 = scmp.ne.s32.totalorder %s159, %s175
    %p177 = scmp.eq.s32.totalorder %s17, 0
    %p178 = por %p176, %p177
    %p179 = scmp.le.s32.totalorder 1, %s11
    %p180 = scmp.lt.s32.totalorder %s11, 3
    %p181 = pnand %p179, %p180
    %p182 = pneg %p181
    // Predicated region
    $region9: #{tpu_custom_call.1} parent=5 // pred_check
      _
    $region10: #{tpu_custom_call.1} parent=5 // pred_check_branch
      %184 = sbr.rel (%p181) target = $region12
    $region11: #{tpu_custom_call.1} parent=5 // pred_region
      %s185 = ssub.s32 %s11, 1
      // Predicated region
      $region13: #{tpu_custom_call.1} parent=11 // pred_check
        %p186 = pneg %p49
      $region14: #{tpu_custom_call.1} parent=11 // pred_check_branch
        %188 = sbr.rel (%p186) target = $region16
      $region15: #{tpu_custom_call.1} parent=11 // pred_region
        %p189 = scmp.lt.s32.totalorder %s20, 0
        %s190 = scalar_select %p189, %s20, 0
        %s191 = smul.addr %s190, 112
        %s192 = smul.addr %s191, 8
        %s193 = scalar_lea.vmem %s0, %s192
      $region16: #{tpu_custom_call.1} parent=11 // pred_fallthru
        _
      // Predicated region
      $region17: #{tpu_custom_call.1} parent=11 // pred_check
        %p194 = pneg %p96
      $region18: #{tpu_custom_call.1} parent=11 // pred_check_branch
        %196 = sbr.rel (%p194) target = $region20
      $region19: #{tpu_custom_call.1} parent=11 // pred_region
        _
      $region20: #{tpu_custom_call.1} parent=11 // pred_fallthru
        _
      // Predicated region
      $region21: #{tpu_custom_call.1} parent=11 // pred_check
        %p197 = pneg %p117
      $region22: #{tpu_custom_call.1} parent=11 // pred_check_branch
        %199 = sbr.rel (%p197) target = $region24
      $region23: #{tpu_custom_call.1} parent=11 // pred_region
        _
      $region24: #{tpu_custom_call.1} parent=11 // pred_fallthru
        _
    $region12: #{tpu_custom_call.1} parent=5 // pred_fallthru
      _
    %p200 = scmp.lt.s32.totalorder %s11, 2
    // Predicated region
    $region25: #{tpu_custom_call.1} parent=5 // pred_check
      %p201 = pneg %p200
    $region26: #{tpu_custom_call.1} parent=5 // pred_check_branch
      %203 = sbr.rel (%p201) target = $region28
    $region27: #{tpu_custom_call.1} parent=5 // pred_region
      // Predicated region
      $region29: #{tpu_custom_call.1} parent=27 // pred_check
        %p204 = pneg %p69
      $region30: #{tpu_custom_call.1} parent=27 // pred_check_branch
        %206 = sbr.rel (%p204) target = $region32
      $region31: #{tpu_custom_call.1} parent=27 // pred_region
        %s207 = smul.u32 8, %s19
        %p208 = scmp.lt.s32.totalorder %s207, 15
        %s209 = scalar_select %p208, %s207, 15
        %s210 = smul.addr %s209, 8
        %s211 = scalar_lea.vmem %s1, %s210
        %s212 = smul.u32 8, %s19
      $region32: #{tpu_custom_call.1} parent=27 // pred_fallthru
        _
      // Predicated region
      $region33: #{tpu_custom_call.1} parent=27 // pred_check
        %p213 = pneg %p137
      $region34: #{tpu_custom_call.1} parent=27 // pred_check_branch
        %215 = sbr.rel (%p213) target = $region36
      $region35: #{tpu_custom_call.1} parent=27 // pred_region
        %s216 = smul.u32 8, %s19
        %p217 = scmp.lt.s32.totalorder %s216, 15
        %s218 = scalar_select %p217, %s216, 15
        %s219 = smul.addr %s218, 8
        %s220 = scalar_lea.vmem %s4, %s219
        %s221 = smul.u32 8, %s19
      $region36: #{tpu_custom_call.1} parent=27 // pred_fallthru
        _
    $region28: #{tpu_custom_call.1} parent=5 // pred_fallthru
      _
    %p222 = scmp.le.s32.totalorder 1, %s11
    %p223 = scmp.lt.s32.totalorder %s11, 3
    %p224 = pnand %p222, %p223
    %p225 = pneg %p224
    // Predicated region
    $region37: #{tpu_custom_call.1} parent=5 // pred_check
      _
    $region38: #{tpu_custom_call.1} parent=5 // pred_check_branch
      %227 = sbr.rel (%p224) target = $region40
    $region39: #{tpu_custom_call.1} parent=5 // pred_region
      %s228 = ssub.s32 %s11, 1
      %p229 = scmp.lt.s32.totalorder %s20, 0
      %s230 = scalar_select %p229, %s20, 0
      %s231 = smul.addr %s230, 112
      %s232 = smul.addr %s231, 8
      %s233 = scalar_lea.vmem %s0, %s232
      %p234 = pneg %p49
      %p235 = pneg %p46
      %s236 = smul.u32 8, %s21
      %p237 = scmp.lt.s32.totalorder %s236, 15
      %s238 = scalar_select %p237, %s236, 15
      %s239 = smul.addr %s238, 8
      %s240 = scalar_lea.vmem %s1, %s239
      %p241 = pneg %p75
      %p242 = pneg %p72
      %p243 = pneg %p96
      %p244 = pneg %p93
      %p245 = pneg %p117
      %p246 = pneg %p114
      %s247 = smul.u32 8, %s21
      %p248 = scmp.lt.s32.totalorder %s247, 15
      %s249 = scalar_select %p248, %s247, 15
      %s250 = smul.addr %s249, 8
      %s251 = scalar_lea.vmem %s4, %s250
      %p252 = pneg %p143
      %p253 = pneg %p140
      %p254 = pneg %p171
      %p255 = pneg %p168
      %s256 = smul.u32 8, %s21
      %p257 = scmp.lt.s32.totalorder %s20, 0
      %s258 = scalar_select %p257, %s20, 0
      %p259 = scmp.lt.s32.totalorder %s256, 15
      %s260 = scalar_select %p259, %s256, 15
      %s261 = smul.addr %s260, 7
      %s262 = smul.addr %s258, 112
      %s263 = sadd.s32 %s261, %s262
      %s264 = smul.addr %s263, 8
      %s265 = scalar_lea.vmem %s5, %s264
      %p266 = scmp.lt.s32.totalorder %s20, 0
      %s267 = scalar_select %p266, %s20, 0
      %s268 = smul.addr %s267, 112
      %s269 = smul.addr %s268, 8
      %s270 = scalar_lea.vmem %s0, %s269
      %s271 = smul.u32 8, %s21
      %p272 = scmp.lt.s32.totalorder %s271, 15
      %s273 = scalar_select %p272, %s271, 15
      %s274 = smul.addr %s273, 8
      %s275 = scalar_lea.vmem %s1, %s274
      %s276 = smul.u32 8, %s21
      %s277 = smul.u32 8, %s21
      %p278 = scmp.lt.s32.totalorder %s277, 15
      %s279 = scalar_select %p278, %s277, 15
      %s280 = smul.addr %s279, 8
      %s281 = scalar_lea.vmem %s4, %s280
      %s282 = smul.u32 8, %s21
      %s283 = smul.u32 8, %s21
      %p284 = scmp.lt.s32.totalorder %s20, 0
      %s285 = scalar_select %p284, %s20, 0
      %p286 = scmp.lt.s32.totalorder %s283, 15
      %s287 = scalar_select %p286, %s283, 15
      %s288 = smul.addr %s287, 7
      %s289 = smul.addr %s285, 112
      %s290 = sadd.s32 %s288, %s289
      %s291 = smul.addr %s290, 8
      %s292 = scalar_lea.vmem %s5, %s291
      %s293 = smul.u32 8, %s21
      %v294 = vld [vmem:[%s270] sm:$0xff]
      %v295 = vld [vmem:[%s270 + $0x8] sm:$0xff]
      %v296 = vld [vmem:[%s270 + $0x10] sm:$0xff]
      %v297 = vld [vmem:[%s270 + $0x18] sm:$0xff]
      %v298 = vld [vmem:[%s270 + $0x20] sm:$0xff]
      %v299 = vld [vmem:[%s270 + $0x28] sm:$0xff]
      %v300 = vld [vmem:[%s270 + $0x30] sm:$0xff]
      %v301 = vld [vmem:[%s270 + $0x38] sm:$0xff]
      %v302 = vld [vmem:[%s270 + $0x40] sm:$0xff]
      %v303 = vld [vmem:[%s270 + $0x48] sm:$0xff]
      %v304 = vld [vmem:[%s270 + $0x50] sm:$0xff]
      %v305 = vld [vmem:[%s270 + $0x58] sm:$0xff]
      %v306 = vld [vmem:[%s270 + $0x60] sm:$0xff]
      %v307 = vld [vmem:[%s270 + $0x68] sm:$0xff]
      %v308 = vld [vmem:[%s270 + $0x70] sm:$0xff]
      %v309 = vld [vmem:[%s270 + $0x78] sm:$0xff]
      %v310 = vld [vmem:[%s270 + $0x80] sm:$0xff]
      %v311 = vld [vmem:[%s270 + $0x88] sm:$0xff]
      %v312 = vld [vmem:[%s270 + $0x90] sm:$0xff]
      %v313 = vld [vmem:[%s270 + $0x98] sm:$0xff]
      %v314 = vld [vmem:[%s270 + $0xa0] sm:$0xff]
      %v315 = vld [vmem:[%s270 + $0xa8] sm:$0xff]
      %v316 = vld [vmem:[%s270 + $0xb0] sm:$0xff]
      %v317 = vld [vmem:[%s270 + $0xb8] sm:$0xff]
      %v318 = vld [vmem:[%s270 + $0xc0] sm:$0xff]
      %v319 = vld [vmem:[%s270 + $0xc8] sm:$0xff]
      %v320 = vld [vmem:[%s270 + $0xd0] sm:$0xff]
      %v321 = vld [vmem:[%s270 + $0xd8] sm:$0xff]
      %v322 = vld [vmem:[%s270 + $0xe0] sm:$0xff]
      %v323 = vld [vmem:[%s270 + $0xe8] sm:$0xff]
      %v324 = vld [vmem:[%s270 + $0xf0] sm:$0xff]
      %v325 = vld [vmem:[%s270 + $0xf8] sm:$0xff]
      %v326 = vld [vmem:[%s270 + $0x100] sm:$0xff]
      %v327 = vld [vmem:[%s270 + $0x108] sm:$0xff]
      %v328 = vld [vmem:[%s270 + $0x110] sm:$0xff]
      %v329 = vld [vmem:[%s270 + $0x118] sm:$0xff]
      %v330 = vld [vmem:[%s270 + $0x120] sm:$0xff]
      %v331 = vld [vmem:[%s270 + $0x128] sm:$0xff]
      %v332 = vld [vmem:[%s270 + $0x130] sm:$0xff]
      %v333 = vld [vmem:[%s270 + $0x138] sm:$0xff]
      %v334 = vld [vmem:[%s270 + $0x140] sm:$0xff]
      %v335 = vld [vmem:[%s270 + $0x148] sm:$0xff]
      %v336 = vld [vmem:[%s270 + $0x150] sm:$0xff]
      %v337 = vld [vmem:[%s270 + $0x158] sm:$0xff]
      %v338 = vld [vmem:[%s270 + $0x160] sm:$0xff]
      %v339 = vld [vmem:[%s270 + $0x168] sm:$0xff]
      %v340 = vld [vmem:[%s270 + $0x170] sm:$0xff]
      %v341 = vld [vmem:[%s270 + $0x178] sm:$0xff]
      %v342 = vld [vmem:[%s270 + $0x180] sm:$0xff]
      %v343 = vld [vmem:[%s270 + $0x188] sm:$0xff]
      %v344 = vld [vmem:[%s270 + $0x190] sm:$0xff]
      %v345 = vld [vmem:[%s270 + $0x198] sm:$0xff]
      %v346 = vld [vmem:[%s270 + $0x1a0] sm:$0xff]
      %v347 = vld [vmem:[%s270 + $0x1a8] sm:$0xff]
      %v348 = vld [vmem:[%s270 + $0x1b0] sm:$0xff]
      %v349 = vld [vmem:[%s270 + $0x1b8] sm:$0xff]
      %v350 = vld [vmem:[%s270 + $0x1c0] sm:$0xff]
      %v351 = vld [vmem:[%s270 + $0x1c8] sm:$0xff]
      %v352 = vld [vmem:[%s270 + $0x1d0] sm:$0xff]
      %v353 = vld [vmem:[%s270 + $0x1d8] sm:$0xff]
      %v354 = vld [vmem:[%s270 + $0x1e0] sm:$0xff]
      %v355 = vld [vmem:[%s270 + $0x1e8] sm:$0xff]
      %v356 = vld [vmem:[%s270 + $0x1f0] sm:$0xff]
      %v357 = vld [vmem:[%s270 + $0x1f8] sm:$0xff]
      %v358 = vld [vmem:[%s270 + $0x200] sm:$0xff]
      %v359 = vld [vmem:[%s270 + $0x208] sm:$0xff]
      %v360 = vld [vmem:[%s270 + $0x210] sm:$0xff]
      %v361 = vld [vmem:[%s270 + $0x218] sm:$0xff]
      %v362 = vld [vmem:[%s270 + $0x220] sm:$0xff]
      %v363 = vld [vmem:[%s270 + $0x228] sm:$0xff]
      %v364 = vld [vmem:[%s270 + $0x230] sm:$0xff]
      %v365 = vld [vmem:[%s270 + $0x238] sm:$0xff]
      %v366 = vld [vmem:[%s270 + $0x240] sm:$0xff]
      %v367 = vld [vmem:[%s270 + $0x248] sm:$0xff]
      %v368 = vld [vmem:[%s270 + $0x250] sm:$0xff]
      %v369 = vld [vmem:[%s270 + $0x258] sm:$0xff]
      %v370 = vld [vmem:[%s270 + $0x260] sm:$0xff]
      %v371 = vld [vmem:[%s270 + $0x268] sm:$0xff]
      %v372 = vld [vmem:[%s270 + $0x270] sm:$0xff]
      %v373 = vld [vmem:[%s270 + $0x278] sm:$0xff]
      %v374 = vld [vmem:[%s270 + $0x280] sm:$0xff]
      %v375 = vld [vmem:[%s270 + $0x288] sm:$0xff]
      %v376 = vld [vmem:[%s270 + $0x290] sm:$0xff]
      %v377 = vld [vmem:[%s270 + $0x298] sm:$0xff]
      %v378 = vld [vmem:[%s270 + $0x2a0] sm:$0xff]
      %v379 = vld [vmem:[%s270 + $0x2a8] sm:$0xff]
      %v380 = vld [vmem:[%s270 + $0x2b0] sm:$0xff]
      %v381 = vld [vmem:[%s270 + $0x2b8] sm:$0xff]
      %v382 = vld [vmem:[%s270 + $0x2c0] sm:$0xff]
      %v383 = vld [vmem:[%s270 + $0x2c8] sm:$0xff]
      %v384 = vld [vmem:[%s270 + $0x2d0] sm:$0xff]
      %v385 = vld [vmem:[%s270 + $0x2d8] sm:$0xff]
      %v386 = vld [vmem:[%s270 + $0x2e0] sm:$0xff]
      %v387 = vld [vmem:[%s270 + $0x2e8] sm:$0xff]
      %v388 = vld [vmem:[%s270 + $0x2f0] sm:$0xff]
      %v389 = vld [vmem:[%s270 + $0x2f8] sm:$0xff]
      %v390 = vld [vmem:[%s270 + $0x300] sm:$0xff]
      %v391 = vld [vmem:[%s270 + $0x308] sm:$0xff]
      %v392 = vld [vmem:[%s270 + $0x310] sm:$0xff]
      %v393 = vld [vmem:[%s270 + $0x318] sm:$0xff]
      %v394 = vld [vmem:[%s270 + $0x320] sm:$0xff]
      %v395 = vld [vmem:[%s270 + $0x328] sm:$0xff]
      %v396 = vld [vmem:[%s270 + $0x330] sm:$0xff]
      %v397 = vld [vmem:[%s270 + $0x338] sm:$0xff]
      %v398 = vld [vmem:[%s270 + $0x340] sm:$0xff]
      %v399 = vld [vmem:[%s270 + $0x348] sm:$0xff]
      %v400 = vld [vmem:[%s270 + $0x350] sm:$0xff]
      %v401 = vld [vmem:[%s270 + $0x358] sm:$0xff]
      %v402 = vld [vmem:[%s270 + $0x360] sm:$0xff]
      %v403 = vld [vmem:[%s270 + $0x368] sm:$0xff]
      %v404 = vld [vmem:[%s270 + $0x370] sm:$0xff]
      %v405 = vld [vmem:[%s270 + $0x378] sm:$0xff]
      %v406 = vld [vmem:[%s2] sm:$0xff]
      %v407 = vld [vmem:[%s2 + $0x8] sm:$0xff]
      %v408 = vld [vmem:[%s2 + $0x10] sm:$0xff]
      %v409 = vld [vmem:[%s2 + $0x18] sm:$0xff]
      %v410 = vld [vmem:[%s2 + $0x20] sm:$0xff]
      %v411 = vld [vmem:[%s2 + $0x28] sm:$0xff]
      %v412 = vld [vmem:[%s2 + $0x30] sm:$0xff]
      %v413 = vld [vmem:[%s2 + $0x38] sm:$0xff]
      %v414 = vld [vmem:[%s2 + $0x40] sm:$0xff]
      %v415 = vld [vmem:[%s2 + $0x48] sm:$0xff]
      %v416 = vld [vmem:[%s2 + $0x50] sm:$0xff]
      %v417 = vld [vmem:[%s2 + $0x58] sm:$0xff]
      %v418 = vld [vmem:[%s2 + $0x60] sm:$0xff]
      %v419 = vld [vmem:[%s2 + $0x68] sm:$0xff]
      %v420 = vld [vmem:[%s2 + $0x70] sm:$0xff]
      %v421 = vld [vmem:[%s2 + $0x78] sm:$0xff]
      %423 = vset.pattern.permute.xlu0 0
      %424 = vperm.xlu0 %423, %v406
      %v425 = vpop.permute.xlu0 %424
      %428 = vset.pattern.permute.xlu0 0
      %429 = vperm.xlu0 %428, %v407
      %v430 = vpop.permute.xlu0 %429
      %433 = vset.pattern.permute.xlu0 0
      %434 = vperm.xlu0 %433, %v408
      %v435 = vpop.permute.xlu0 %434
      %438 = vset.pattern.permute.xlu0 0
      %439 = vperm.xlu0 %438, %v409
      %v440 = vpop.permute.xlu0 %439
      %443 = vset.pattern.permute.xlu0 0
      %444 = vperm.xlu0 %443, %v410
      %v445 = vpop.permute.xlu0 %444
      %448 = vset.pattern.permute.xlu0 0
      %449 = vperm.xlu0 %448, %v411
      %v450 = vpop.permute.xlu0 %449
      %453 = vset.pattern.permute.xlu0 0
      %454 = vperm.xlu0 %453, %v412
      %v455 = vpop.permute.xlu0 %454
      %458 = vset.pattern.permute.xlu0 0
      %459 = vperm.xlu0 %458, %v413
      %v460 = vpop.permute.xlu0 %459
      %463 = vset.pattern.permute.xlu0 0
      %464 = vperm.xlu0 %463, %v414
      %v465 = vpop.permute.xlu0 %464
      %468 = vset.pattern.permute.xlu0 0
      %469 = vperm.xlu0 %468, %v415
      %v470 = vpop.permute.xlu0 %469
      %473 = vset.pattern.permute.xlu0 0
      %474 = vperm.xlu0 %473, %v416
      %v475 = vpop.permute.xlu0 %474
      %478 = vset.pattern.permute.xlu0 0
      %479 = vperm.xlu0 %478, %v417
      %v480 = vpop.permute.xlu0 %479
      %483 = vset.pattern.permute.xlu0 0
      %484 = vperm.xlu0 %483, %v418
      %v485 = vpop.permute.xlu0 %484
      %488 = vset.pattern.permute.xlu0 0
      %489 = vperm.xlu0 %488, %v419
      %v490 = vpop.permute.xlu0 %489
      %493 = vset.pattern.permute.xlu0 0
      %494 = vperm.xlu0 %493, %v420
      %v495 = vpop.permute.xlu0 %494
      %498 = vset.pattern.permute.xlu0 0
      %499 = vperm.xlu0 %498, %v421
      %v500 = vpop.permute.xlu0 %499
      %v502 = vmul.f32 %v294, %v425
      %v503 = vmul.f32 %v295, %v425
      %v504 = vmul.f32 %v296, %v425
      %v505 = vmul.f32 %v297, %v425
      %v506 = vmul.f32 %v298, %v425
      %v507 = vmul.f32 %v299, %v425
      %v508 = vmul.f32 %v300, %v425
      %v509 = vmul.f32 %v301, %v430
      %v510 = vmul.f32 %v302, %v430
      %v511 = vmul.f32 %v303, %v430
      %v512 = vmul.f32 %v304, %v430
      %v513 = vmul.f32 %v305, %v430
      %v514 = vmul.f32 %v306, %v430
      %v515 = vmul.f32 %v307, %v430
      %v516 = vmul.f32 %v308, %v435
      %v517 = vmul.f32 %v309, %v435
      %v518 = vmul.f32 %v310, %v435
      %v519 = vmul.f32 %v311, %v435
      %v520 = vmul.f32 %v312, %v435
      %v521 = vmul.f32 %v313, %v435
      %v522 = vmul.f32 %v314, %v435
      %v523 = vmul.f32 %v315, %v440
      %v524 = vmul.f32 %v316, %v440
      %v525 = vmul.f32 %v317, %v440
      %v526 = vmul.f32 %v318, %v440
      %v527 = vmul.f32 %v319, %v440
      %v528 = vmul.f32 %v320, %v440
      %v529 = vmul.f32 %v321, %v440
      %v530 = vmul.f32 %v322, %v445
      %v531 = vmul.f32 %v323, %v445
      %v532 = vmul.f32 %v324, %v445
      %v533 = vmul.f32 %v325, %v445
      %v534 = vmul.f32 %v326, %v445
      %v535 = vmul.f32 %v327, %v445
      %v536 = vmul.f32 %v328, %v445
      %v537 = vmul.f32 %v329, %v450
      %v538 = vmul.f32 %v330, %v450
      %v539 = vmul.f32 %v331, %v450
      %v540 = vmul.f32 %v332, %v450
      %v541 = vmul.f32 %v333, %v450
      %v542 = vmul.f32 %v334, %v450
      %v543 = vmul.f32 %v335, %v450
      %v544 = vmul.f32 %v336, %v455
      %v545 = vmul.f32 %v337, %v455
      %v546 = vmul.f32 %v338, %v455
      %v547 = vmul.f32 %v339, %v455
      %v548 = vmul.f32 %v340, %v455
      %v549 = vmul.f32 %v341, %v455
      %v550 = vmul.f32 %v342, %v455
      %v551 = vmul.f32 %v343, %v460
      %v552 = vmul.f32 %v344, %v460
      %v553 = vmul.f32 %v345, %v460
      %v554 = vmul.f32 %v346, %v460
      %v555 = vmul.f32 %v347, %v460
      %v556 = vmul.f32 %v348, %v460
      %v557 = vmul.f32 %v349, %v460
      %v558 = vmul.f32 %v350, %v465
      %v559 = vmul.f32 %v351, %v465
      %v560 = vmul.f32 %v352, %v465
      %v561 = vmul.f32 %v353, %v465
      %v562 = vmul.f32 %v354, %v465
      %v563 = vmul.f32 %v355, %v465
      %v564 = vmul.f32 %v356, %v465
      %v565 = vmul.f32 %v357, %v470
      %v566 = vmul.f32 %v358, %v470
      %v567 = vmul.f32 %v359, %v470
      %v568 = vmul.f32 %v360, %v470
      %v569 = vmul.f32 %v361, %v470
      %v570 = vmul.f32 %v362, %v470
      %v571 = vmul.f32 %v363, %v470
      %v572 = vmul.f32 %v364, %v475
      %v573 = vmul.f32 %v365, %v475
      %v574 = vmul.f32 %v366, %v475
      %v575 = vmul.f32 %v367, %v475
      %v576 = vmul.f32 %v368, %v475
      %v577 = vmul.f32 %v369, %v475
      %v578 = vmul.f32 %v370, %v475
      %v579 = vmul.f32 %v371, %v480
      %v580 = vmul.f32 %v372, %v480
      %v581 = vmul.f32 %v373, %v480
      %v582 = vmul.f32 %v374, %v480
      %v583 = vmul.f32 %v375, %v480
      %v584 = vmul.f32 %v376, %v480
      %v585 = vmul.f32 %v377, %v480
      %v586 = vmul.f32 %v378, %v485
      %v587 = vmul.f32 %v379, %v485
      %v588 = vmul.f32 %v380, %v485
      %v589 = vmul.f32 %v381, %v485
      %v590 = vmul.f32 %v382, %v485
      %v591 = vmul.f32 %v383, %v485
      %v592 = vmul.f32 %v384, %v485
      %v593 = vmul.f32 %v385, %v490
      %v594 = vmul.f32 %v386, %v490
      %v595 = vmul.f32 %v387, %v490
      %v596 = vmul.f32 %v388, %v490
      %v597 = vmul.f32 %v389, %v490
      %v598 = vmul.f32 %v390, %v490
      %v599 = vmul.f32 %v391, %v490
      %v600 = vmul.f32 %v392, %v495
      %v601 = vmul.f32 %v393, %v495
      %v602 = vmul.f32 %v394, %v495
      %v603 = vmul.f32 %v395, %v495
      %v604 = vmul.f32 %v396, %v495
      %v605 = vmul.f32 %v397, %v495
      %v606 = vmul.f32 %v398, %v495
      %v607 = vmul.f32 %v399, %v500
      %v608 = vmul.f32 %v400, %v500
      %v609 = vmul.f32 %v401, %v500
      %v610 = vmul.f32 %v402, %v500
      %v611 = vmul.f32 %v403, %v500
      %v612 = vmul.f32 %v404, %v500
      %v613 = vmul.f32 %v405, %v500
      %v614 = vld [vmem:[%s3] sm:$0xff]
      %v615 = vld [vmem:[%s3 + $0x8] sm:$0xff]
      %v616 = vld [vmem:[%s3 + $0x10] sm:$0xff]
      %v617 = vld [vmem:[%s3 + $0x18] sm:$0xff]
      %v618 = vld [vmem:[%s3 + $0x20] sm:$0xff]
      %v619 = vld [vmem:[%s3 + $0x28] sm:$0xff]
      %v620 = vld [vmem:[%s3 + $0x30] sm:$0xff]
      %v621 = vld [vmem:[%s3 + $0x38] sm:$0xff]
      %v622 = vld [vmem:[%s3 + $0x40] sm:$0xff]
      %v623 = vld [vmem:[%s3 + $0x48] sm:$0xff]
      %v624 = vld [vmem:[%s3 + $0x50] sm:$0xff]
      %v625 = vld [vmem:[%s3 + $0x58] sm:$0xff]
      %v626 = vld [vmem:[%s3 + $0x60] sm:$0xff]
      %v627 = vld [vmem:[%s3 + $0x68] sm:$0xff]
      %v628 = vld [vmem:[%s3 + $0x70] sm:$0xff]
      %v629 = vld [vmem:[%s3 + $0x78] sm:$0xff]
      %631 = vset.pattern.permute.xlu0 0
      %632 = vperm.xlu0 %631, %v614
      %v633 = vpop.permute.xlu0 %632
      %636 = vset.pattern.permute.xlu0 0
      %637 = vperm.xlu0 %636, %v615
      %v638 = vpop.permute.xlu0 %637
      %641 = vset.pattern.permute.xlu0 0
      %642 = vperm.xlu0 %641, %v616
      %v643 = vpop.permute.xlu0 %642
      %646 = vset.pattern.permute.xlu0 0
      %647 = vperm.xlu0 %646, %v617
      %v648 = vpop.permute.xlu0 %647
      %651 = vset.pattern.permute.xlu0 0
      %652 = vperm.xlu0 %651, %v618
      %v653 = vpop.permute.xlu0 %652
      %656 = vset.pattern.permute.xlu0 0
      %657 = vperm.xlu0 %656, %v619
      %v658 = vpop.permute.xlu0 %657
      %661 = vset.pattern.permute.xlu0 0
      %662 = vperm.xlu0 %661, %v620
      %v663 = vpop.permute.xlu0 %662
      %666 = vset.pattern.permute.xlu0 0
      %667 = vperm.xlu0 %666, %v621
      %v668 = vpop.permute.xlu0 %667
      %671 = vset.pattern.permute.xlu0 0
      %672 = vperm.xlu0 %671, %v622
      %v673 = vpop.permute.xlu0 %672
      %676 = vset.pattern.permute.xlu0 0
      %677 = vperm.xlu0 %676, %v623
      %v678 = vpop.permute.xlu0 %677
      %681 = vset.pattern.permute.xlu0 0
      %682 = vperm.xlu0 %681, %v624
      %v683 = vpop.permute.xlu0 %682
      %686 = vset.pattern.permute.xlu0 0
      %687 = vperm.xlu0 %686, %v625
      %v688 = vpop.permute.xlu0 %687
      %691 = vset.pattern.permute.xlu0 0
      %692 = vperm.xlu0 %691, %v626
      %v693 = vpop.permute.xlu0 %692
      %696 = vset.pattern.permute.xlu0 0
      %697 = vperm.xlu0 %696, %v627
      %v698 = vpop.permute.xlu0 %697
      %701 = vset.pattern.permute.xlu0 0
      %702 = vperm.xlu0 %701, %v628
      %v703 = vpop.permute.xlu0 %702
      %706 = vset.pattern.permute.xlu0 0
      %707 = vperm.xlu0 %706, %v629
      %v708 = vpop.permute.xlu0 %707
      %v710 = vadd.f32 %v502, %v633
      %v711 = vadd.f32 %v503, %v633
      %v712 = vadd.f32 %v504, %v633
      %v713 = vadd.f32 %v505, %v633
      %v714 = vadd.f32 %v506, %v633
      %v715 = vadd.f32 %v507, %v633
      %v716 = vadd.f32 %v508, %v633
      %v717 = vadd.f32 %v509, %v638
      %v718 = vadd.f32 %v510, %v638
      %v719 = vadd.f32 %v511, %v638
      %v720 = vadd.f32 %v512, %v638
      %v721 = vadd.f32 %v513, %v638
      %v722 = vadd.f32 %v514, %v638
      %v723 = vadd.f32 %v515, %v638
      %v724 = vadd.f32 %v516, %v643
      %v725 = vadd.f32 %v517, %v643
      %v726 = vadd.f32 %v518, %v643
      %v727 = vadd.f32 %v519, %v643
      %v728 = vadd.f32 %v520, %v643
      %v729 = vadd.f32 %v521, %v643
      %v730 = vadd.f32 %v522, %v643
      %v731 = vadd.f32 %v523, %v648
      %v732 = vadd.f32 %v524, %v648
      %v733 = vadd.f32 %v525, %v648
      %v734 = vadd.f32 %v526, %v648
      %v735 = vadd.f32 %v527, %v648
      %v736 = vadd.f32 %v528, %v648
      %v737 = vadd.f32 %v529, %v648
      %v738 = vadd.f32 %v530, %v653
      %v739 = vadd.f32 %v531, %v653
      %v740 = vadd.f32 %v532, %v653
      %v741 = vadd.f32 %v533, %v653
      %v742 = vadd.f32 %v534, %v653
      %v743 = vadd.f32 %v535, %v653
      %v744 = vadd.f32 %v536, %v653
      %v745 = vadd.f32 %v537, %v658
      %v746 = vadd.f32 %v538, %v658
      %v747 = vadd.f32 %v539, %v658
      %v748 = vadd.f32 %v540, %v658
      %v749 = vadd.f32 %v541, %v658
      %v750 = vadd.f32 %v542, %v658
      %v751 = vadd.f32 %v543, %v658
      %v752 = vadd.f32 %v544, %v663
      %v753 = vadd.f32 %v545, %v663
      %v754 = vadd.f32 %v546, %v663
      %v755 = vadd.f32 %v547, %v663
      %v756 = vadd.f32 %v548, %v663
      %v757 = vadd.f32 %v549, %v663
      %v758 = vadd.f32 %v550, %v663
      %v759 = vadd.f32 %v551, %v668
      %v760 = vadd.f32 %v552, %v668
      %v761 = vadd.f32 %v553, %v668
      %v762 = vadd.f32 %v554, %v668
      %v763 = vadd.f32 %v555, %v668
      %v764 = vadd.f32 %v556, %v668
      %v765 = vadd.f32 %v557, %v668
      %v766 = vadd.f32 %v558, %v673
      %v767 = vadd.f32 %v559, %v673
      %v768 = vadd.f32 %v560, %v673
      %v769 = vadd.f32 %v561, %v673
      %v770 = vadd.f32 %v562, %v673
      %v771 = vadd.f32 %v563, %v673
      %v772 = vadd.f32 %v564, %v673
      %v773 = vadd.f32 %v565, %v678
      %v774 = vadd.f32 %v566, %v678
      %v775 = vadd.f32 %v567, %v678
      %v776 = vadd.f32 %v568, %v678
      %v777 = vadd.f32 %v569, %v678
      %v778 = vadd.f32 %v570, %v678
      %v779 = vadd.f32 %v571, %v678
      %v780 = vadd.f32 %v572, %v683
      %v781 = vadd.f32 %v573, %v683
      %v782 = vadd.f32 %v574, %v683
      %v783 = vadd.f32 %v575, %v683
      %v784 = vadd.f32 %v576, %v683
      %v785 = vadd.f32 %v577, %v683
      %v786 = vadd.f32 %v578, %v683
      %v787 = vadd.f32 %v579, %v688
      %v788 = vadd.f32 %v580, %v688
      %v789 = vadd.f32 %v581, %v688
      %v790 = vadd.f32 %v582, %v688
      %v791 = vadd.f32 %v583, %v688
      %v792 = vadd.f32 %v584, %v688
      %v793 = vadd.f32 %v585, %v688
      %v794 = vadd.f32 %v586, %v693
      %v795 = vadd.f32 %v587, %v693
      %v796 = vadd.f32 %v588, %v693
      %v797 = vadd.f32 %v589, %v693
      %v798 = vadd.f32 %v590, %v693
      %v799 = vadd.f32 %v591, %v693
      %v800 = vadd.f32 %v592, %v693
      %v801 = vadd.f32 %v593, %v698
      %v802 = vadd.f32 %v594, %v698
      %v803 = vadd.f32 %v595, %v698
      %v804 = vadd.f32 %v596, %v698
      %v805 = vadd.f32 %v597, %v698
      %v806 = vadd.f32 %v598, %v698
      %v807 = vadd.f32 %v599, %v698
      %v808 = vadd.f32 %v600, %v703
      %v809 = vadd.f32 %v601, %v703
      %v810 = vadd.f32 %v602, %v703
      %v811 = vadd.f32 %v603, %v703
      %v812 = vadd.f32 %v604, %v703
      %v813 = vadd.f32 %v605, %v703
      %v814 = vadd.f32 %v606, %v703
      %v815 = vadd.f32 %v607, %v708
      %v816 = vadd.f32 %v608, %v708
      %v817 = vadd.f32 %v609, %v708
      %v818 = vadd.f32 %v610, %v708
      %v819 = vadd.f32 %v611, %v708
      %v820 = vadd.f32 %v612, %v708
      %v821 = vadd.f32 %v613, %v708
      %v822 = vmax.f32 %v710, 0.0
      %v823 = vmax.f32 %v711, 0.0
      %v824 = vmax.f32 %v712, 0.0
      %v825 = vmax.f32 %v713, 0.0
      %v826 = vmax.f32 %v714, 0.0
      %v827 = vmax.f32 %v715, 0.0
      %v828 = vmax.f32 %v716, 0.0
      %v829 = vmax.f32 %v717, 0.0
      %v830 = vmax.f32 %v718, 0.0
      %v831 = vmax.f32 %v719, 0.0
      %v832 = vmax.f32 %v720, 0.0
      %v833 = vmax.f32 %v721, 0.0
      %v834 = vmax.f32 %v722, 0.0
      %v835 = vmax.f32 %v723, 0.0
      %v836 = vmax.f32 %v724, 0.0
      %v837 = vmax.f32 %v725, 0.0
      %v838 = vmax.f32 %v726, 0.0
      %v839 = vmax.f32 %v727, 0.0
      %v840 = vmax.f32 %v728, 0.0
      %v841 = vmax.f32 %v729, 0.0
      %v842 = vmax.f32 %v730, 0.0
      %v843 = vmax.f32 %v731, 0.0
      %v844 = vmax.f32 %v732, 0.0
      %v845 = vmax.f32 %v733, 0.0
      %v846 = vmax.f32 %v734, 0.0
      %v847 = vmax.f32 %v735, 0.0
      %v848 = vmax.f32 %v736, 0.0
      %v849 = vmax.f32 %v737, 0.0
      %v850 = vmax.f32 %v738, 0.0
      %v851 = vmax.f32 %v739, 0.0
      %v852 = vmax.f32 %v740, 0.0
      %v853 = vmax.f32 %v741, 0.0
      %v854 = vmax.f32 %v742, 0.0
      %v855 = vmax.f32 %v743, 0.0
      %v856 = vmax.f32 %v744, 0.0
      %v857 = vmax.f32 %v745, 0.0
      %v858 = vmax.f32 %v746, 0.0
      %v859 = vmax.f32 %v747, 0.0
      %v860 = vmax.f32 %v748, 0.0
      %v861 = vmax.f32 %v749, 0.0
      %v862 = vmax.f32 %v750, 0.0
      %v863 = vmax.f32 %v751, 0.0
      %v864 = vmax.f32 %v752, 0.0
      %v865 = vmax.f32 %v753, 0.0
      %v866 = vmax.f32 %v754, 0.0
      %v867 = vmax.f32 %v755, 0.0
      %v868 = vmax.f32 %v756, 0.0
      %v869 = vmax.f32 %v757, 0.0
      %v870 = vmax.f32 %v758, 0.0
      %v871 = vmax.f32 %v759, 0.0
      %v872 = vmax.f32 %v760, 0.0
      %v873 = vmax.f32 %v761, 0.0
      %v874 = vmax.f32 %v762, 0.0
      %v875 = vmax.f32 %v763, 0.0
      %v876 = vmax.f32 %v764, 0.0
      %v877 = vmax.f32 %v765, 0.0
      %v878 = vmax.f32 %v766, 0.0
      %v879 = vmax.f32 %v767, 0.0
      %v880 = vmax.f32 %v768, 0.0
      %v881 = vmax.f32 %v769, 0.0
      %v882 = vmax.f32 %v770, 0.0
      %v883 = vmax.f32 %v771, 0.0
      %v884 = vmax.f32 %v772, 0.0
      %v885 = vmax.f32 %v773, 0.0
      %v886 = vmax.f32 %v774, 0.0
      %v887 = vmax.f32 %v775, 0.0
      %v888 = vmax.f32 %v776, 0.0
      %v889 = vmax.f32 %v777, 0.0
      %v890 = vmax.f32 %v778, 0.0
      %v891 = vmax.f32 %v779, 0.0
      %v892 = vmax.f32 %v780, 0.0
      %v893 = vmax.f32 %v781, 0.0
      %v894 = vmax.f32 %v782, 0.0
      %v895 = vmax.f32 %v783, 0.0
      %v896 = vmax.f32 %v784, 0.0
      %v897 = vmax.f32 %v785, 0.0
      %v898 = vmax.f32 %v786, 0.0
      %v899 = vmax.f32 %v787, 0.0
      %v900 = vmax.f32 %v788, 0.0
      %v901 = vmax.f32 %v789, 0.0
      %v902 = vmax.f32 %v790, 0.0
      %v903 = vmax.f32 %v791, 0.0
      %v904 = vmax.f32 %v792, 0.0
      %v905 = vmax.f32 %v793, 0.0
      %v906 = vmax.f32 %v794, 0.0
      %v907 = vmax.f32 %v795, 0.0
      %v908 = vmax.f32 %v796, 0.0
      %v909 = vmax.f32 %v797, 0.0
      %v910 = vmax.f32 %v798, 0.0
      %v911 = vmax.f32 %v799, 0.0
      %v912 = vmax.f32 %v800, 0.0
      %v913 = vmax.f32 %v801, 0.0
      %v914 = vmax.f32 %v802, 0.0
      %v915 = vmax.f32 %v803, 0.0
      %v916 = vmax.f32 %v804, 0.0
      %v917 = vmax.f32 %v805, 0.0
      %v918 = vmax.f32 %v806, 0.0
      %v919 = vmax.f32 %v807, 0.0
      %v920 = vmax.f32 %v808, 0.0
      %v921 = vmax.f32 %v809, 0.0
      %v922 = vmax.f32 %v810, 0.0
      %v923 = vmax.f32 %v811, 0.0
      %v924 = vmax.f32 %v812, 0.0
      %v925 = vmax.f32 %v813, 0.0
      %v926 = vmax.f32 %v814, 0.0
      %v927 = vmax.f32 %v815, 0.0
      %v928 = vmax.f32 %v816, 0.0
      %v929 = vmax.f32 %v817, 0.0
      %v930 = vmax.f32 %v818, 0.0
      %v931 = vmax.f32 %v819, 0.0
      %v932 = vmax.f32 %v820, 0.0
      %v933 = vmax.f32 %v821, 0.0
      %v934 = vld [vmem:[%s275] sm:$0xff]
      %v935 = vld [vmem:[%s275 + $0x8] sm:$0xff]
      %v936 = vld [vmem:[%s275 + $0x10] sm:$0xff]
      %v937 = vld [vmem:[%s275 + $0x18] sm:$0xff]
      %v938 = vld [vmem:[%s275 + $0x20] sm:$0xff]
      %v939 = vld [vmem:[%s275 + $0x28] sm:$0xff]
      %v940 = vld [vmem:[%s275 + $0x30] sm:$0xff]
      %v941 = vld [vmem:[%s275 + $0x38] sm:$0xff]
      %v942 = vld [vmem:[%s281] sm:$0xff]
      %v943 = vld [vmem:[%s281 + $0x8] sm:$0xff]
      %v944 = vld [vmem:[%s281 + $0x10] sm:$0xff]
      %v945 = vld [vmem:[%s281 + $0x18] sm:$0xff]
      %v946 = vld [vmem:[%s281 + $0x20] sm:$0xff]
      %v947 = vld [vmem:[%s281 + $0x28] sm:$0xff]
      %v948 = vld [vmem:[%s281 + $0x30] sm:$0xff]
      %v949 = vld [vmem:[%s281 + $0x38] sm:$0xff]
      %951 = vset.pattern.permute.xlu0 0
      %952 = vperm.xlu0 %951, %v942
      %v953 = vpop.permute.xlu0 %952
      %956 = vset.pattern.permute.xlu0 0
      %957 = vperm.xlu0 %956, %v943
      %v958 = vpop.permute.xlu0 %957
      %961 = vset.pattern.permute.xlu0 0
      %962 = vperm.xlu0 %961, %v944
      %v963 = vpop.permute.xlu0 %962
      %966 = vset.pattern.permute.xlu0 0
      %967 = vperm.xlu0 %966, %v945
      %v968 = vpop.permute.xlu0 %967
      %971 = vset.pattern.permute.xlu0 0
      %972 = vperm.xlu0 %971, %v946
      %v973 = vpop.permute.xlu0 %972
      %976 = vset.pattern.permute.xlu0 0
      %977 = vperm.xlu0 %976, %v947
      %v978 = vpop.permute.xlu0 %977
      %981 = vset.pattern.permute.xlu0 0
      %982 = vperm.xlu0 %981, %v948
      %v983 = vpop.permute.xlu0 %982
      %986 = vset.pattern.permute.xlu0 0
      %987 = vperm.xlu0 %986, %v949
      %v988 = vpop.permute.xlu0 %987
      %990 = vmatprep.subr.mxu0 %v823
      %991 = vmatpush1.msra.mxu0 %v822
      %992 = vmatprep.subr.mxu0 %v830
      %993 = vmatpush1.msra.mxu0 %v829
      %994 = vmatprep.subr.mxu0 %v837
      %995 = vmatpush1.msra.mxu0 %v836
      %996 = vmatprep.subr.mxu0 %v844
      %997 = vmatpush1.msra.mxu0 %v843
      %998 = vmatprep.subr.mxu0 %v851
      %999 = vmatpush1.msra.mxu0 %v850
      %1000 = vmatprep.subr.mxu0 %v858
      %1001 = vmatpush1.msra.mxu0 %v857
      %1002 = vmatprep.subr.mxu0 %v865
      %1003 = vmatpush1.msra.mxu0 %v864
      %1004 = vmatprep.subr.mxu0 %v872
      %1005 = vmatpush1.msra.mxu0 %v871
      %1006 = vmatprep.subr.mxu0 %v879
      %1007 = vmatpush1.msra.mxu0 %v878
      %1008 = vmatprep.subr.mxu0 %v886
      %1009 = vmatpush1.msra.mxu0 %v885
      %1010 = vmatprep.subr.mxu0 %v893
      %1011 = vmatpush1.msra.mxu0 %v892
      %1012 = vmatprep.subr.mxu0 %v900
      %1013 = vmatpush1.msra.mxu0 %v899
      %1014 = vmatprep.subr.mxu0 %v907
      %1015 = vmatpush1.msra.mxu0 %v906
      %1016 = vmatprep.subr.mxu0 %v914
      %1017 = vmatpush1.msra.mxu0 %v913
      %1018 = vmatprep.subr.mxu0 %v921
      %1019 = vmatpush1.msra.mxu0 %v920
      %1020 = vmatprep.subr.mxu0 %v928
      %1021 = vmatpush1.msra.mxu0 %v927
      %1022 = vmatprep.subr.mxu0 0.0
      %1023 = vmatpush1.msra.mxu0 0.0
      %1024 = vmatprep.subr.mxu0 0.0
      %1025 = vmatpush1.msra.mxu0 0.0
      %1026 = vmatprep.subr.mxu0 0.0
      %1027 = vmatpush1.msra.mxu0 0.0
      %1028 = vmatprep.subr.mxu0 0.0
      %1029 = vmatpush1.msra.mxu0 0.0
      %1030 = vmatprep.subr.mxu0 0.0
      %1031 = vmatpush1.msra.mxu0 0.0
      %1032 = vmatprep.subr.mxu0 0.0
      %1033 = vmatpush1.msra.mxu0 0.0
      %1034 = vmatprep.subr.mxu0 0.0
      %1035 = vmatpush1.msra.mxu0 0.0
      %1036 = vmatprep.subr.mxu0 0.0
      %1037 = vmatpush1.msra.mxu0 0.0
      %1038 = vmatprep.subr.mxu0 0.0
      %1039 = vmatpush1.msra.mxu0 0.0
      %1040 = vmatprep.subr.mxu0 0.0
      %1041 = vmatpush1.msra.mxu0 0.0
      %1042 = vmatprep.subr.mxu0 0.0
      %1043 = vmatpush1.msra.mxu0 0.0
      %1044 = vmatprep.subr.mxu0 0.0
      %1045 = vmatpush1.msra.mxu0 0.0
      %1046 = vmatprep.subr.mxu0 0.0
      %1047 = vmatpush1.msra.mxu0 0.0
      %1048 = vmatprep.subr.mxu0 0.0
      %1049 = vmatpush1.msra.mxu0 0.0
      %1050 = vmatprep.subr.mxu0 0.0
      %1051 = vmatpush1.msra.mxu0 0.0
      %1052 = vmatprep.subr.mxu0 0.0
      %1053 = vmatpush1.msra.mxu0 0.0
      %1054 = vmatprep.mubr.f32.mxu0 0.0
      %1055 = vmatmul.mubr.f32.gmra.mrb[0].mxu0 %v934
      %v1056 = vpop.f32.mrb[0].mxu0
      %v1057 = vadd.f32 %v953, %v1056
      %v1058 = vpop.f32.mrb[0].mxu0
      %v1059 = vadd.f32 %v953, %v1058
      %1060 = vmatprep.mubr.f32.mxu0 0.0
      %1061 = vmatmul.mubr.f32.gmra.mrb[0].mxu0 %v935
      %v1062 = vpop.f32.mrb[0].mxu0
      %v1063 = vadd.f32 %v958, %v1062
      %v1064 = vpop.f32.mrb[0].mxu0
      %v1065 = vadd.f32 %v958, %v1064
      %1066 = vmatprep.mubr.f32.mxu0 0.0
      %1067 = vmatmul.mubr.f32.gmra.mrb[0].mxu0 %v936
      %v1068 = vpop.f32.mrb[0].mxu0
      %v1069 = vadd.f32 %v963, %v1068
      %v1070 = vpop.f32.mrb[0].mxu0
      %v1071 = vadd.f32 %v963, %v1070
      %1072 = vmatprep.mubr.f32.mxu0 0.0
      %1073 = vmatmul.mubr.f32.gmra.mrb[0].mxu0 %v937
      %v1074 = vpop.f32.mrb[0].mxu0
      %v1075 = vadd.f32 %v968, %v1074
      %v1076 = vpop.f32.mrb[0].mxu0
      %v1077 = vadd.f32 %v968, %v1076
      %1078 = vmatprep.mubr.f32.mxu0 0.0
      %1079 = vmatmul.mubr.f32.gmra.mrb[0].mxu0 %v938
      %v1080 = vpop.f32.mrb[0].mxu0
      %v1081 = vadd.f32 %v973, %v1080
      %v1082 = vpop.f32.mrb[0].mxu0
      %v1083 = vadd.f32 %v973, %v1082
      %1084 = vmatprep.mubr.f32.mxu0 0.0
      %1085 = vmatmul.mubr.f32.gmra.mrb[0].mxu0 %v939
      %v1086 = vpop.f32.mrb[0].mxu0
      %v1087 = vadd.f32 %v978, %v1086
      %v1088 = vpop.f32.mrb[0].mxu0
      %v1089 = vadd.f32 %v978, %v1088
      %1090 = vmatprep.mubr.f32.mxu0 0.0
      %1091 = vmatmul.mubr.f32.gmra.mrb[0].mxu0 %v940
      %v1092 = vpop.f32.mrb[0].mxu0
      %v1093 = vadd.f32 %v983, %v1092
      %v1094 = vpop.f32.mrb[0].mxu0
      %v1095 = vadd.f32 %v983, %v1094
      %1096 = vmatprep.mubr.f32.mxu0 0.0
      %1097 = vmatmul.mubr.f32.gmra.mrb[0].mxu0 %v941
      %v1098 = vpop.f32.mrb[0].mxu0
      %v1099 = vadd.f32 %v988, %v1098
      %v1100 = vpop.f32.mrb[0].mxu0
      %v1101 = vadd.f32 %v988, %v1100
      %1102 = vdwg.mxu0
      %1103 = vmatprep.subr.mxu0 %v825
      %1104 = vmatpush1.msra.mxu0 %v824
      %1105 = vmatprep.subr.mxu0 %v832
      %1106 = vmatpush1.msra.mxu0 %v831
      %1107 = vmatprep.subr.mxu0 %v839
      %1108 = vmatpush1.msra.mxu0 %v838
      %1109 = vmatprep.subr.mxu0 %v846
      %1110 = vmatpush1.msra.mxu0 %v845
      %1111 = vmatprep.subr.mxu0 %v853
      %1112 = vmatpush1.msra.mxu0 %v852
      %1113 = vmatprep.subr.mxu0 %v860
      %1114 = vmatpush1.msra.mxu0 %v859
      %1115 = vmatprep.subr.mxu0 %v867
      %1116 = vmatpush1.msra.mxu0 %v866
      %1117 = vmatprep.subr.mxu0 %v874
      %1118 = vmatpush1.msra.mxu0 %v873
      %1119 = vmatprep.subr.mxu0 %v881
      %1120 = vmatpush1.msra.mxu0 %v880
      %1121 = vmatprep.subr.mxu0 %v888
      %1122 = vmatpush1.msra.mxu0 %v887
      %1123 = vmatprep.subr.mxu0 %v895
      %1124 = vmatpush1.msra.mxu0 %v894
      %1125 = vmatprep.subr.mxu0 %v902
      %1126 = vmatpush1.msra.mxu0 %v901
      %1127 = vmatprep.subr.mxu0 %v909
      %1128 = vmatpush1.msra.mxu0 %v908
      %1129 = vmatprep.subr.mxu0 %v916
      %1130 = vmatpush1.msra.mxu0 %v915
      %1131 = vmatprep.subr.mxu0 %v923
      %1132 = vmatpush1.msra.mxu0 %v922
      %1133 = vmatprep.subr.mxu0 %v930
      %1134 = vmatpush1.msra.mxu0 %v929
      %1135 = vmatprep.subr.mxu0 0.0
      %1136 = vmatpush1.msra.mxu0 0.0
      %1137 = vmatprep.subr.mxu0 0.0
      %1138 = vmatpush1.msra.mxu0 0.0
      %1139 = vmatprep.subr.mxu0 0.0
      %1140 = vmatpush1.msra.mxu0 0.0
      %1141 = vmatprep.subr.mxu0 0.0
      %1142 = vmatpush1.msra.mxu0 0.0
      %1143 = vmatprep.subr.mxu0 0.0
      %1144 = vmatpush1.msra.mxu0 0.0
      %1145 = vmatprep.subr.mxu0 0.0
      %1146 = vmatpush1.msra.mxu0 0.0
      %1147 = vmatprep.subr.mxu0 0.0
      %1148 = vmatpush1.msra.mxu0 0.0
      %1149 = vmatprep.subr.mxu0 0.0
      %1150 = vmatpush1.msra.mxu0 0.0
      %1151 = vmatprep.subr.mxu0 0.0
      %1152 = vmatpush1.msra.mxu0 0.0
      %1153 = vmatprep.subr.mxu0 0.0
      %1154 = vmatpush1.msra.mxu0 0.0
      %1155 = vmatprep.subr.mxu0 0.0
      %1156 = vmatpush1.msra.mxu0 0.0
      %1157 = vmatprep.subr.mxu0 0.0
      %1158 = vmatpush1.msra.mxu0 0.0
      %1159 = vmatprep.subr.mxu0 0.0
      %1160 = vmatpush1.msra.mxu0 0.0
      %1161 = vmatprep.subr.mxu0 0.0
      %1162 = vmatpush1.msra.mxu0 0.0
      %1163 = vmatprep.subr.mxu0 0.0
      %1164 = vmatpush1.msra.mxu0 0.0
      %1165 = vmatprep.subr.mxu0 0.0
      %1166 = vmatpush1.msra.mxu0 0.0
      %1167 = vmatprep.mubr.f32.mxu0 0.0
      %1168 = vmatmul.mubr.f32.gmra.mrb[0].mxu0 %v934
      %v1169 = vpop.f32.mrb[0].mxu0
      %v1170 = vadd.f32 %v953, %v1169
      %v1171 = vpop.f32.mrb[0].mxu0
      %v1172 = vadd.f32 %v953, %v1171
      %1173 = vmatprep.mubr.f32.mxu0 0.0
      %1174 = vmatmul.mubr.f32.gmra.mrb[0].mxu0 %v935
      %v1175 = vpop.f32.mrb[0].mxu0
      %v1176 = vadd.f32 %v958, %v1175
      %v1177 = vpop.f32.mrb[0].mxu0
      %v1178 = vadd.f32 %v958, %v1177
      %1179 = vmatprep.mubr.f32.mxu0 0.0
      %1180 = vmatmul.mubr.f32.gmra.mrb[0].mxu0 %v936
      %v1181 = vpop.f32.mrb[0].mxu0
      %v1182 = vadd.f32 %v963, %v1181
      %v1183 = vpop.f32.mrb[0].mxu0
      %v1184 = vadd.f32 %v963, %v1183
      %1185 = vmatprep.mubr.f32.mxu0 0.0
      %1186 = vmatmul.mubr.f32.gmra.mrb[0].mxu0 %v937
      %v1187 = vpop.f32.mrb[0].mxu0
      %v1188 = vadd.f32 %v968, %v1187
      %v1189 = vpop.f32.mrb[0].mxu0
      %v1190 = vadd.f32 %v968, %v1189
      %1191 = vmatprep.mubr.f32.mxu0 0.0
      %1192 = vmatmul.mubr.f32.gmra.mrb[0].mxu0 %v938
      %v1193 = vpop.f32.mrb[0].mxu0
      %v1194 = vadd.f32 %v973, %v1193
      %v1195 = vpop.f32.mrb[0].mxu0
      %v1196 = vadd.f32 %v973, %v1195
      %1197 = vmatprep.mubr.f32.mxu0 0.0
      %1198 = vmatmul.mubr.f32.gmra.mrb[0].mxu0 %v939
      %v1199 = vpop.f32.mrb[0].mxu0
      %v1200 = vadd.f32 %v978, %v1199
      %v1201 = vpop.f32.mrb[0].mxu0
      %v1202 = vadd.f32 %v978, %v1201
      %1203 = vmatprep.mubr.f32.mxu0 0.0
      %1204 = vmatmul.mubr.f32.gmra.mrb[0].mxu0 %v940
      %v1205 = vpop.f32.mrb[0].mxu0
      %v1206 = vadd.f32 %v983, %v1205
      %v1207 = vpop.f32.mrb[0].mxu0
      %v1208 = vadd.f32 %v983, %v1207
      %1209 = vmatprep.mubr.f32.mxu0 0.0
      %1210 = vmatmul.mubr.f32.gmra.mrb[0].mxu0 %v941
      %v1211 = vpop.f32.mrb[0].mxu0
      %v1212 = vadd.f32 %v988, %v1211
      %v1213 = vpop.f32.mrb[0].mxu0
      %v1214 = vadd.f32 %v988, %v1213
      %1215 = vdwg.mxu0
      %1216 = vmatprep.subr.mxu0 %v827
      %1217 = vmatpush1.msra.mxu0 %v826
      %1218 = vmatprep.subr.mxu0 %v834
      %1219 = vmatpush1.msra.mxu0 %v833
      %1220 = vmatprep.subr.mxu0 %v841
      %1221 = vmatpush1.msra.mxu0 %v840
      %1222 = vmatprep.subr.mxu0 %v848
      %1223 = vmatpush1.msra.mxu0 %v847
      %1224 = vmatprep.subr.mxu0 %v855
      %1225 = vmatpush1.msra.mxu0 %v854
      %1226 = vmatprep.subr.mxu0 %v862
      %1227 = vmatpush1.msra.mxu0 %v861
      %1228 = vmatprep.subr.mxu0 %v869
      %1229 = vmatpush1.msra.mxu0 %v868
      %1230 = vmatprep.subr.mxu0 %v876
      %1231 = vmatpush1.msra.mxu0 %v875
      %1232 = vmatprep.subr.mxu0 %v883
      %1233 = vmatpush1.msra.mxu0 %v882
      %1234 = vmatprep.subr.mxu0 %v890
      %1235 = vmatpush1.msra.mxu0 %v889
      %1236 = vmatprep.subr.mxu0 %v897
      %1237 = vmatpush1.msra.mxu0 %v896
      %1238 = vmatprep.subr.mxu0 %v904
      %1239 = vmatpush1.msra.mxu0 %v903
      %1240 = vmatprep.subr.mxu0 %v911
      %1241 = vmatpush1.msra.mxu0 %v910
      %1242 = vmatprep.subr.mxu0 %v918
      %1243 = vmatpush1.msra.mxu0 %v917
      %1244 = vmatprep.subr.mxu0 %v925
      %1245 = vmatpush1.msra.mxu0 %v924
      %1246 = vmatprep.subr.mxu0 %v932
      %1247 = vmatpush1.msra.mxu0 %v931
      %1248 = vmatprep.subr.mxu0 0.0
      %1249 = vmatpush1.msra.mxu0 0.0
      %1250 = vmatprep.subr.mxu0 0.0
      %1251 = vmatpush1.msra.mxu0 0.0
      %1252 = vmatprep.subr.mxu0 0.0
      %1253 = vmatpush1.msra.mxu0 0.0
      %1254 = vmatprep.subr.mxu0 0.0
      %1255 = vmatpush1.msra.mxu0 0.0
      %1256 = vmatprep.subr.mxu0 0.0
      %1257 = vmatpush1.msra.mxu0 0.0
      %1258 = vmatprep.subr.mxu0 0.0
      %1259 = vmatpush1.msra.mxu0 0.0
      %1260 = vmatprep.subr.mxu0 0.0
      %1261 = vmatpush1.msra.mxu0 0.0
      %1262 = vmatprep.subr.mxu0 0.0
      %1263 = vmatpush1.msra.mxu0 0.0
      %1264 = vmatprep.subr.mxu0 0.0
      %1265 = vmatpush1.msra.mxu0 0.0
      %1266 = vmatprep.subr.mxu0 0.0
      %1267 = vmatpush1.msra.mxu0 0.0
      %1268 = vmatprep.subr.mxu0 0.0
      %1269 = vmatpush1.msra.mxu0 0.0
      %1270 = vmatprep.subr.mxu0 0.0
      %1271 = vmatpush1.msra.mxu0 0.0
      %1272 = vmatprep.subr.mxu0 0.0
      %1273 = vmatpush1.msra.mxu0 0.0
      %1274 = vmatprep.subr.mxu0 0.0
      %1275 = vmatpush1.msra.mxu0 0.0
      %1276 = vmatprep.subr.mxu0 0.0
      %1277 = vmatpush1.msra.mxu0 0.0
      %1278 = vmatprep.subr.mxu0 0.0
      %1279 = vmatpush1.msra.mxu0 0.0
      %1280 = vmatprep.mubr.f32.mxu0 0.0
      %1281 = vmatmul.mubr.f32.gmra.mrb[0].mxu0 %v934
      %v1282 = vpop.f32.mrb[0].mxu0
      %v1283 = vadd.f32 %v953, %v1282
      %v1284 = vpop.f32.mrb[0].mxu0
      %v1285 = vadd.f32 %v953, %v1284
      %1286 = vmatprep.mubr.f32.mxu0 0.0
      %1287 = vmatmul.mubr.f32.gmra.mrb[0].mxu0 %v935
      %v1288 = vpop.f32.mrb[0].mxu0
      %v1289 = vadd.f32 %v958, %v1288
      %v1290 = vpop.f32.mrb[0].mxu0
      %v1291 = vadd.f32 %v958, %v1290
      %1292 = vmatprep.mubr.f32.mxu0 0.0
      %1293 = vmatmul.mubr.f32.gmra.mrb[0].mxu0 %v936
      %v1294 = vpop.f32.mrb[0].mxu0
      %v1295 = vadd.f32 %v963, %v1294
      %v1296 = vpop.f32.mrb[0].mxu0
      %v1297 = vadd.f32 %v963, %v1296
      %1298 = vmatprep.mubr.f32.mxu0 0.0
      %1299 = vmatmul.mubr.f32.gmra.mrb[0].mxu0 %v937
      %v1300 = vpop.f32.mrb[0].mxu0
      %v1301 = vadd.f32 %v968, %v1300
      %v1302 = vpop.f32.mrb[0].mxu0
      %v1303 = vadd.f32 %v968, %v1302
      %1304 = vmatprep.mubr.f32.mxu0 0.0
      %1305 = vmatmul.mubr.f32.gmra.mrb[0].mxu0 %v938
      %v1306 = vpop.f32.mrb[0].mxu0
      %v1307 = vadd.f32 %v973, %v1306
      %v1308 = vpop.f32.mrb[0].mxu0
      %v1309 = vadd.f32 %v973, %v1308
      %1310 = vmatprep.mubr.f32.mxu0 0.0
      %1311 = vmatmul.mubr.f32.gmra.mrb[0].mxu0 %v939
      %v1312 = vpop.f32.mrb[0].mxu0
      %v1313 = vadd.f32 %v978, %v1312
      %v1314 = vpop.f32.mrb[0].mxu0
      %v1315 = vadd.f32 %v978, %v1314
      %1316 = vmatprep.mubr.f32.mxu0 0.0
      %1317 = vmatmul.mubr.f32.gmra.mrb[0].mxu0 %v940
      %v1318 = vpop.f32.mrb[0].mxu0
      %v1319 = vadd.f32 %v983, %v1318
      %v1320 = vpop.f32.mrb[0].mxu0
      %v1321 = vadd.f32 %v983, %v1320
      %1322 = vmatprep.mubr.f32.mxu0 0.0
      %1323 = vmatmul.mubr.f32.gmra.mrb[0].mxu0 %v941
      %v1324 = vpop.f32.mrb[0].mxu0
      %v1325 = vadd.f32 %v988, %v1324
      %v1326 = vpop.f32.mrb[0].mxu0
      %v1327 = vadd.f32 %v988, %v1326
      %1328 = vdwg.mxu0
      %1329 = vmatprep.subr.mxu0 0.0
      %1330 = vmatpush1.msra.mxu0 %v828
      %1331 = vmatprep.subr.mxu0 0.0
      %1332 = vmatpush1.msra.mxu0 %v835
      %1333 = vmatprep.subr.mxu0 0.0
      %1334 = vmatpush1.msra.mxu0 %v842
      %1335 = vmatprep.subr.mxu0 0.0
      %1336 = vmatpush1.msra.mxu0 %v849
      %1337 = vmatprep.subr.mxu0 0.0
      %1338 = vmatpush1.msra.mxu0 %v856
      %1339 = vmatprep.subr.mxu0 0.0
      %1340 = vmatpush1.msra.mxu0 %v863
      %1341 = vmatprep.subr.mxu0 0.0
      %1342 = vmatpush1.msra.mxu0 %v870
      %1343 = vmatprep.subr.mxu0 0.0
      %1344 = vmatpush1.msra.mxu0 %v877
      %1345 = vmatprep.subr.mxu0 0.0
      %1346 = vmatpush1.msra.mxu0 %v884
      %1347 = vmatprep.subr.mxu0 0.0
      %1348 = vmatpush1.msra.mxu0 %v891
      %1349 = vmatprep.subr.mxu0 0.0
      %1350 = vmatpush1.msra.mxu0 %v898
      %1351 = vmatprep.subr.mxu0 0.0
      %1352 = vmatpush1.msra.mxu0 %v905
      %1353 = vmatprep.subr.mxu0 0.0
      %1354 = vmatpush1.msra.mxu0 %v912
      %1355 = vmatprep.subr.mxu0 0.0
      %1356 = vmatpush1.msra.mxu0 %v919
      %1357 = vmatprep.subr.mxu0 0.0
      %1358 = vmatpush1.msra.mxu0 %v926
      %1359 = vmatprep.subr.mxu0 0.0
      %1360 = vmatpush1.msra.mxu0 %v933
      %1361 = vmatprep.subr.mxu0 0.0
      %1362 = vmatpush1.msra.mxu0 0.0
      %1363 = vmatprep.subr.mxu0 0.0
      %1364 = vmatpush1.msra.mxu0 0.0
      %1365 = vmatprep.subr.mxu0 0.0
      %1366 = vmatpush1.msra.mxu0 0.0
      %1367 = vmatprep.subr.mxu0 0.0
      %1368 = vmatpush1.msra.mxu0 0.0
      %1369 = vmatprep.subr.mxu0 0.0
      %1370 = vmatpush1.msra.mxu0 0.0
      %1371 = vmatprep.subr.mxu0 0.0
      %1372 = vmatpush1.msra.mxu0 0.0
      %1373 = vmatprep.subr.mxu0 0.0
      %1374 = vmatpush1.msra.mxu0 0.0
      %1375 = vmatprep.subr.mxu0 0.0
      %1376 = vmatpush1.msra.mxu0 0.0
      %1377 = vmatprep.subr.mxu0 0.0
      %1378 = vmatpush1.msra.mxu0 0.0
      %1379 = vmatprep.subr.mxu0 0.0
      %1380 = vmatpush1.msra.mxu0 0.0
      %1381 = vmatprep.subr.mxu0 0.0
      %1382 = vmatpush1.msra.mxu0 0.0
      %1383 = vmatprep.subr.mxu0 0.0
      %1384 = vmatpush1.msra.mxu0 0.0
      %1385 = vmatprep.subr.mxu0 0.0
      %1386 = vmatpush1.msra.mxu0 0.0
      %1387 = vmatprep.subr.mxu0 0.0
      %1388 = vmatpush1.msra.mxu0 0.0
      %1389 = vmatprep.subr.mxu0 0.0
      %1390 = vmatpush1.msra.mxu0 0.0
      %1391 = vmatprep.subr.mxu0 0.0
      %1392 = vmatpush1.msra.mxu0 0.0
      %1393 = vmatprep.mubr.f32.mxu0 0.0
      %1394 = vmatmul.mubr.f32.gmra.mrb[0].mxu0 %v934
      %v1395 = vpop.f32.mrb[0].mxu0
      %v1396 = vadd.f32 %v953, %v1395
      %v1397 = vpop.f32.mrb[0].mxu0
      %1398 = vmatprep.mubr.f32.mxu0 0.0
      %1399 = vmatmul.mubr.f32.gmra.mrb[0].mxu0 %v935
      %v1400 = vpop.f32.mrb[0].mxu0
      %v1401 = vadd.f32 %v958, %v1400
      %v1402 = vpop.f32.mrb[0].mxu0
      %1403 = vmatprep.mubr.f32.mxu0 0.0
      %1404 = vmatmul.mubr.f32.gmra.mrb[0].mxu0 %v936
      %v1405 = vpop.f32.mrb[0].mxu0
      %v1406 = vadd.f32 %v963, %v1405
      %v1407 = vpop.f32.mrb[0].mxu0
      %1408 = vmatprep.mubr.f32.mxu0 0.0
      %1409 = vmatmul.mubr.f32.gmra.mrb[0].mxu0 %v937
      %v1410 = vpop.f32.mrb[0].mxu0
      %v1411 = vadd.f32 %v968, %v1410
      %v1412 = vpop.f32.mrb[0].mxu0
      %1413 = vmatprep.mubr.f32.mxu0 0.0
      %1414 = vmatmul.mubr.f32.gmra.mrb[0].mxu0 %v938
      %v1415 = vpop.f32.mrb[0].mxu0
      %v1416 = vadd.f32 %v973, %v1415
      %v1417 = vpop.f32.mrb[0].mxu0
      %1418 = vmatprep.mubr.f32.mxu0 0.0
      %1419 = vmatmul.mubr.f32.gmra.mrb[0].mxu0 %v939
      %v1420 = vpop.f32.mrb[0].mxu0
      %v1421 = vadd.f32 %v978, %v1420
      %v1422 = vpop.f32.mrb[0].mxu0
      %1423 = vmatprep.mubr.f32.mxu0 0.0
      %1424 = vmatmul.mubr.f32.gmra.mrb[0].mxu0 %v940
      %v1425 = vpop.f32.mrb[0].mxu0
      %v1426 = vadd.f32 %v983, %v1425
      %v1427 = vpop.f32.mrb[0].mxu0
      %1428 = vmatprep.mubr.f32.mxu0 0.0
      %1429 = vmatmul.mubr.f32.gmra.mrb[0].mxu0 %v941
      %v1430 = vpop.f32.mrb[0].mxu0
      %v1431 = vadd.f32 %v988, %v1430
      %v1432 = vpop.f32.mrb[0].mxu0
      %1433 = vdwg.mxu0
      %v1434 = vmax.f32 %v1057, 0.0
      %v1435 = vmax.f32 %v1059, 0.0
      %v1436 = vmax.f32 %v1170, 0.0
      %v1437 = vmax.f32 %v1172, 0.0
      %v1438 = vmax.f32 %v1283, 0.0
      %v1439 = vmax.f32 %v1285, 0.0
      %v1440 = vmax.f32 %v1396, 0.0
      %v1441 = vmax.f32 %v1063, 0.0
      %v1442 = vmax.f32 %v1065, 0.0
      %v1443 = vmax.f32 %v1176, 0.0
      %v1444 = vmax.f32 %v1178, 0.0
      %v1445 = vmax.f32 %v1289, 0.0
      %v1446 = vmax.f32 %v1291, 0.0
      %v1447 = vmax.f32 %v1401, 0.0
      %v1448 = vmax.f32 %v1069, 0.0
      %v1449 = vmax.f32 %v1071, 0.0
      %v1450 = vmax.f32 %v1182, 0.0
      %v1451 = vmax.f32 %v1184, 0.0
      %v1452 = vmax.f32 %v1295, 0.0
      %v1453 = vmax.f32 %v1297, 0.0
      %v1454 = vmax.f32 %v1406, 0.0
      %v1455 = vmax.f32 %v1075, 0.0
      %v1456 = vmax.f32 %v1077, 0.0
      %v1457 = vmax.f32 %v1188, 0.0
      %v1458 = vmax.f32 %v1190, 0.0
      %v1459 = vmax.f32 %v1301, 0.0
      %v1460 = vmax.f32 %v1303, 0.0
      %v1461 = vmax.f32 %v1411, 0.0
      %v1462 = vmax.f32 %v1081, 0.0
      %v1463 = vmax.f32 %v1083, 0.0
      %v1464 = vmax.f32 %v1194, 0.0
      %v1465 = vmax.f32 %v1196, 0.0
      %v1466 = vmax.f32 %v1307, 0.0
      %v1467 = vmax.f32 %v1309, 0.0
      %v1468 = vmax.f32 %v1416, 0.0
      %v1469 = vmax.f32 %v1087, 0.0
      %v1470 = vmax.f32 %v1089, 0.0
      %v1471 = vmax.f32 %v1200, 0.0
      %v1472 = vmax.f32 %v1202, 0.0
      %v1473 = vmax.f32 %v1313, 0.0
      %v1474 = vmax.f32 %v1315, 0.0
      %v1475 = vmax.f32 %v1421, 0.0
      %v1476 = vmax.f32 %v1093, 0.0
      %v1477 = vmax.f32 %v1095, 0.0
      %v1478 = vmax.f32 %v1206, 0.0
      %v1479 = vmax.f32 %v1208, 0.0
      %v1480 = vmax.f32 %v1319, 0.0
      %v1481 = vmax.f32 %v1321, 0.0
      %v1482 = vmax.f32 %v1426, 0.0
      %v1483 = vmax.f32 %v1099, 0.0
      %v1484 = vmax.f32 %v1101, 0.0
      %v1485 = vmax.f32 %v1212, 0.0
      %v1486 = vmax.f32 %v1214, 0.0
      %v1487 = vmax.f32 %v1325, 0.0
      %v1488 = vmax.f32 %v1327, 0.0
      %v1489 = vmax.f32 %v1431, 0.0
      %1490 = vst [vmem:[%s292] sm:$0xff] %v1434
      %1491 = vst [vmem:[%s292 + $0x8] sm:$0xff] %v1435
      %1492 = vst [vmem:[%s292 + $0x10] sm:$0xff] %v1436
      %1493 = vst [vmem:[%s292 + $0x18] sm:$0xff] %v1437
      %1494 = vst [vmem:[%s292 + $0x20] sm:$0xff] %v1438
      %1495 = vst [vmem:[%s292 + $0x28] sm:$0xff] %v1439
      %vm1496 = vcmask 130048
      %1497 = vst.msk [vmem:[%s292 + $0x30] sm:$0xff] %vm1496, %v1440
      %1498 = vst [vmem:[%s292 + $0x38] sm:$0xff] %v1441
      %1499 = vst [vmem:[%s292 + $0x40] sm:$0xff] %v1442
      %1500 = vst [vmem:[%s292 + $0x48] sm:$0xff] %v1443
      %1501 = vst [vmem:[%s292 + $0x50] sm:$0xff] %v1444
      %1502 = vst [vmem:[%s292 + $0x58] sm:$0xff] %v1445
      %1503 = vst [vmem:[%s292 + $0x60] sm:$0xff] %v1446
      %1504 = vst.msk [vmem:[%s292 + $0x68] sm:$0xff] %vm1496, %v1447
      %1505 = vst [vmem:[%s292 + $0x70] sm:$0xff] %v1448
      %1506 = vst [vmem:[%s292 + $0x78] sm:$0xff] %v1449
      %1507 = vst [vmem:[%s292 + $0x80] sm:$0xff] %v1450
      %1508 = vst [vmem:[%s292 + $0x88] sm:$0xff] %v1451
      %1509 = vst [vmem:[%s292 + $0x90] sm:$0xff] %v1452
      %1510 = vst [vmem:[%s292 + $0x98] sm:$0xff] %v1453
      %1511 = vst.msk [vmem:[%s292 + $0xa0] sm:$0xff] %vm1496, %v1454
      %1512 = vst [vmem:[%s292 + $0xa8] sm:$0xff] %v1455
      %1513 = vst [vmem:[%s292 + $0xb0] sm:$0xff] %v1456
      %1514 = vst [vmem:[%s292 + $0xb8] sm:$0xff] %v1457
      %1515 = vst [vmem:[%s292 + $0xc0] sm:$0xff] %v1458
      %1516 = vst [vmem:[%s292 + $0xc8] sm:$0xff] %v1459
      %1517 = vst [vmem:[%s292 + $0xd0] sm:$0xff] %v1460
      %1518 = vst.msk [vmem:[%s292 + $0xd8] sm:$0xff] %vm1496, %v1461
      %1519 = vst [vmem:[%s292 + $0xe0] sm:$0xff] %v1462
      %1520 = vst [vmem:[%s292 + $0xe8] sm:$0xff] %v1463
      %1521 = vst [vmem:[%s292 + $0xf0] sm:$0xff] %v1464
      %1522 = vst [vmem:[%s292 + $0xf8] sm:$0xff] %v1465
      %1523 = vst [vmem:[%s292 + $0x100] sm:$0xff] %v1466
      %1524 = vst [vmem:[%s292 + $0x108] sm:$0xff] %v1467
      %1525 = vst.msk [vmem:[%s292 + $0x110] sm:$0xff] %vm1496, %v1468
      %1526 = vst [vmem:[%s292 + $0x118] sm:$0xff] %v1469
      %1527 = vst [vmem:[%s292 + $0x120] sm:$0xff] %v1470
      %1528 = vst [vmem:[%s292 + $0x128] sm:$0xff] %v1471
      %1529 = vst [vmem:[%s292 + $0x130] sm:$0xff] %v1472
      %1530 = vst [vmem:[%s292 + $0x138] sm:$0xff] %v1473
      %1531 = vst [vmem:[%s292 + $0x140] sm:$0xff] %v1474
      %1532 = vst.msk [vmem:[%s292 + $0x148] sm:$0xff] %vm1496, %v1475
      %1533 = vst [vmem:[%s292 + $0x150] sm:$0xff] %v1476
      %1534 = vst [vmem:[%s292 + $0x158] sm:$0xff] %v1477
      %1535 = vst [vmem:[%s292 + $0x160] sm:$0xff] %v1478
      %1536 = vst [vmem:[%s292 + $0x168] sm:$0xff] %v1479
      %1537 = vst [vmem:[%s292 + $0x170] sm:$0xff] %v1480
      %1538 = vst [vmem:[%s292 + $0x178] sm:$0xff] %v1481
      %1539 = vst.msk [vmem:[%s292 + $0x180] sm:$0xff] %vm1496, %v1482
      %1540 = vst [vmem:[%s292 + $0x188] sm:$0xff] %v1483
      %1541 = vst [vmem:[%s292 + $0x190] sm:$0xff] %v1484
      %1542 = vst [vmem:[%s292 + $0x198] sm:$0xff] %v1485
      %1543 = vst [vmem:[%s292 + $0x1a0] sm:$0xff] %v1486
      %1544 = vst [vmem:[%s292 + $0x1a8] sm:$0xff] %v1487
      %1545 = vst [vmem:[%s292 + $0x1b0] sm:$0xff] %v1488
      %1546 = vst.msk [vmem:[%s292 + $0x1b8] sm:$0xff] %vm1496, %v1489
      %s1547 = smul.u32 8, %s21
      %p1548 = scmp.lt.s32.totalorder %s20, 0
      %s1549 = scalar_select %p1548, %s20, 0
      %p1550 = scmp.lt.s32.totalorder %s1547, 15
      %s1551 = scalar_select %p1550, %s1547, 15
      %s1552 = smul.addr %s1551, 7
      %s1553 = smul.addr %s1549, 112
      %s1554 = sadd.s32 %s1552, %s1553
      %s1555 = smul.addr %s1554, 8
      %s1556 = scalar_lea.vmem %s5, %s1555
      // Predicated region
      $region41: #{tpu_custom_call.1} parent=39 // pred_check
        %p1557 = pneg %p168
      $region42: #{tpu_custom_call.1} parent=39 // pred_check_branch
        %1559 = sbr.rel (%p1557) target = $region44
      $region43: #{tpu_custom_call.1} parent=39 // pred_region
        %s1560 = smul.u32 8, %s21
      $region44: #{tpu_custom_call.1} parent=39 // pred_fallthru
        _
    $region40: #{tpu_custom_call.1} parent=5 // pred_fallthru
      _
    %p1561 = scmp.le.s32.totalorder 2, %s11
    // Predicated region
    $region45: #{tpu_custom_call.1} parent=5 // pred_check
      %p1562 = pneg %p1561
    $region46: #{tpu_custom_call.1} parent=5 // pred_check_branch
      %1564 = sbr.rel (%p1562) target = $region48
    $region47: #{tpu_custom_call.1} parent=5 // pred_region
      %s1565 = ssub.s32 %s11, 2
      // Predicated region
      $region49: #{tpu_custom_call.1} parent=47 // pred_check
        %p1566 = pneg %p174
      $region50: #{tpu_custom_call.1} parent=47 // pred_check_branch
        %1568 = sbr.rel (%p1566) target = $region52
      $region51: #{tpu_custom_call.1} parent=47 // pred_region
        %s1569 = smul.u32 8, %s23
        %p1570 = scmp.lt.s32.totalorder %s22, 0
        %s1571 = scalar_select %p1570, %s22, 0
        %p1572 = scmp.lt.s32.totalorder %s1569, 15
        %s1573 = scalar_select %p1572, %s1569, 15
        %s1574 = smul.addr %s1573, 7
        %s1575 = smul.addr %s1571, 112
        %s1576 = sadd.s32 %s1574, %s1575
        %s1577 = smul.addr %s1576, 8
        %s1578 = scalar_lea.vmem %s5, %s1577
      $region52: #{tpu_custom_call.1} parent=47 // pred_fallthru
        _
    $region48: #{tpu_custom_call.1} parent=5 // pred_fallthru
      _
  $region6: #{tpu_custom_call.1} parent=0 // loop_footer
    %s15 = sadd.s32 1, %s11
  $region7: #{tpu_custom_call.1} parent=0 // loop_footer_branch
    %10 = sbr.rel target = $region3
  $region8: #{tpu_custom_call.1} parent=0 // loop_exit
    _

</llo_original>
